<compile_context>
chip_gen: v7x
topology: tpu7x:2x2x1
jax: 0.10.0
libtpu: 0.0.40
codegen_flags: <defaults>
</compile_context>

<pallas_src>
import jax
import jax.numpy as jnp
from jax.experimental import pallas as pl
from jax.experimental.pallas import tpu as pltpu

ENC_CH = 512            # U_Net3D_encoder output channels
GLOB_CH = 64            # graph-attended global feature channels
FEAT = ENC_CH + GLOB_CH # 576 = 512 + 64
HID = 256               # attention_gate_share hidden size


def fine_lstm_kernel(feat_ref, coarse_ref, w_share_ref, b_share_ref,
                     w_head_ref, b_head_ref, w_dec_ref, b_dec_ref,
                     size_inv_ref, out_ref):
    T = feat_ref.shape[0]
    L = feat_ref.shape[1]

    coarse = coarse_ref[...]                       # (L, 3)      f32
    w_share = w_share_ref[...]                     # (Fp, HID)   bf16
    b_share = b_share_ref[...]                     # (1, HID)    f32
    b_head = b_head_ref[...]                       # (L, 1)      f32
    # Gate-head filters tiled once for the fused (2L, HID) activation block.
    w_head2 = jnp.concatenate([w_head_ref[...], w_head_ref[...]], axis=0)
    w_dec = w_dec_ref[...]                         # (L, 3, Fp)  f32
    b_dec = b_dec_ref[...]                         # (L, 3)      f32
    size_inv = size_inv_ref[...]                   # (1, 3)      f32

    h = None
    c = None
    predict = coarse
    for i in range(T):                             # static unroll of the true recurrence
        feats = feat_ref[i]                        # (L, Fp) f32
        rois = predict                             # eval path: ROIs = previous predict

        if i == 0:
            # i == 0: h_state = features, c_state = ROIs (= coarse predict).
            h = feats
            c = rois
        else:
            # Fused gate: one (2L,Fp)x(Fp,HID) bf16 MXU dot, f32 accumulate.
            stacked = jnp.concatenate([h, feats], axis=0).astype(jnp.bfloat16)
            t = jnp.tanh(
                jnp.dot(stacked, w_share, preferred_element_type=jnp.float32)
                + b_share)                                           # (2L, HID) f32
            # attention_gate_head: grouped Conv1d(L,L,HID,groups=L) ==
            # per-landmark dot -> VPU multiply + lane reduction.
            logits = jnp.sum(t * w_head2, axis=-1, keepdims=True)    # (2L, 1)
            g_f = logits[:L] + b_head
            g_a = logits[L:] + b_head
            # softmax over the 2-way gate == sigmoid of the logit difference (EUP).
            gate0 = jax.nn.sigmoid(g_f - g_a)                        # (L, 1)
            gate1 = 1.0 - gate0
            h = h * gate0 + feats * gate1
            c = c * gate0 + rois * gate1

        # decoders_offset_{x,y,z}: Conv1d(L, L, FEAT, groups=L) == per-landmark
        # dot with its own FEAT-long filter.  All three packed into (L,3,Fp):
        # one VPU multiply + one lane reduction.
        off = jnp.sum(h[:, None, :] * w_dec, axis=-1) + b_dec        # (L, 3)

        predict = off * size_inv + c                                 # (L, 3)
        out_ref[i] = predict      # VMEM-resident output block; HBM flush at end


def fine_lstm_forward(coarse_landmarks, enc_features, glob_features, params,
                      size_tensor_inv):
    """Eval-phase fine_LSTM forward (batch 1, squeezed).

    coarse_landmarks: (L, 3)        initial predict
    enc_features:     (T, L, 512)   per-iteration encoder crop features
    glob_features:    (T, L, 64)    per-iteration graph-attended global features
    size_tensor_inv:  (1, 3)
    returns predicts: (T, L, 3)
    """
    (w_share, b_share, w_head, b_head, wx, wy, wz, b_dec) = params
    T, L, _ = enc_features.shape

    # torch.cat((features, global_feature), dim=2) -- wrapper glue only.
    features = jnp.concatenate([enc_features, glob_features], axis=-1)
    F = features.shape[-1]
    # Lane-align the contraction dim: 576 -> 640 (5x128).  Zero padding is
    # exact (padded lanes contribute nothing to any dot / reduction).
    Fp = ((F + 127) // 128) * 128
    pad = Fp - F

    features = jnp.pad(features, ((0, 0), (0, 0), (0, pad)))
    w_share_p = jnp.pad(w_share, ((0, pad), (0, 0))).astype(jnp.bfloat16)
    # Pack the three grouped decoder filters into one (L, 3, Fp) tensor.
    w_dec = jnp.pad(jnp.stack([wx, wy, wz], axis=1), ((0, 0), (0, 0), (0, pad)))

    full2 = lambda i: (0, 0)
    full3 = lambda i: (0, 0, 0)

    return pl.pallas_call(
        fine_lstm_kernel,
        out_shape=jax.ShapeDtypeStruct((T, L, 3), jnp.float32),
        grid_spec=pltpu.PrefetchScalarGridSpec(
            num_scalar_prefetch=0,
            grid=(1,),                                    # T collapsed in-kernel
            in_specs=[
                pl.BlockSpec((T, L, Fp), full3),          # features (all iterations)
                pl.BlockSpec((L, 3), full2),              # coarse landmarks
                pl.BlockSpec((Fp, HID), full2),           # W_share (bf16)
                pl.BlockSpec((1, HID), full2),            # b_share
                pl.BlockSpec((L, HID), full2),            # W_head
                pl.BlockSpec((L, 1), full2),              # b_head
                pl.BlockSpec((L, 3, Fp), full3),          # packed W_dec_{x,y,z}
                pl.BlockSpec((L, 3), full2),              # b_dec
                pl.BlockSpec((1, 3), full2),              # size_tensor_inv
            ],
            out_specs=pl.BlockSpec((T, L, 3), full3),
        ),
        compiler_params=pltpu.CompilerParams(
            dimension_semantics=("arbitrary",)),
    )(features, coarse_landmarks, w_share_p, b_share, w_head, b_head,
      w_dec, b_dec, size_tensor_inv)


def fine_lstm_ref(coarse_landmarks, enc_features, glob_features, params,
                  size_tensor_inv):
    """Pure-JAX reference mirroring the PyTorch forward (eval path, f32)."""
    (w_share, b_share, w_head, b_head, wx, wy, wz, b_dec) = params
    features = jnp.concatenate([enc_features, glob_features], axis=-1)
    T = features.shape[0]
    predict = coarse_landmarks
    h = c = None
    outs = []
    for i in range(T):
        feats = features[i]
        rois = predict
        if i == 0:
            h, c = feats, rois
        else:
            def gate_logit(s):
                t = jnp.tanh(s @ w_share + b_share)
                return jnp.sum(t * w_head, axis=-1, keepdims=True) + b_head
            logits = jnp.concatenate([gate_logit(h), gate_logit(feats)], axis=-1)
            gate = jax.nn.softmax(logits, axis=-1)
            g0, g1 = gate[:, :1], gate[:, 1:]
            h = h * g0 + feats * g1
            c = c * g0 + rois * g1
        off = jnp.stack([jnp.sum(h * wx, axis=-1),
                         jnp.sum(h * wy, axis=-1),
                         jnp.sum(h * wz, axis=-1)], axis=-1) + b_dec
        predict = off * size_tensor_inv + c
        outs.append(predict)
    return jnp.stack(outs, axis=0)


if __name__ == "__main__":
    LANDMARK_NUM = 8
    ITERATION = 3

    key = jax.random.PRNGKey(0)
    ks = jax.random.split(key, 12)

    coarse = jax.random.uniform(ks[0], (LANDMARK_NUM, 3), jnp.float32)
    enc_feat = jax.random.normal(ks[1], (ITERATION, LANDMARK_NUM, ENC_CH),
                                 jnp.float32) * 0.1
    glob_feat = jax.random.normal(ks[2], (ITERATION, LANDMARK_NUM, GLOB_CH),
                                  jnp.float32) * 0.1

    w_share = jax.random.normal(ks[3], (FEAT, HID), jnp.float32) * 0.05
    b_share = jax.random.normal(ks[4], (1, HID), jnp.float32) * 0.01
    w_head = jax.random.normal(ks[5], (LANDMARK_NUM, HID), jnp.float32) * 0.05
    b_head = jax.random.normal(ks[6], (LANDMARK_NUM, 1), jnp.float32) * 0.01
    wx = jax.random.normal(ks[7], (LANDMARK_NUM, FEAT), jnp.float32) * 0.05
    wy = jax.random.normal(ks[8], (LANDMARK_NUM, FEAT), jnp.float32) * 0.05
    wz = jax.random.normal(ks[9], (LANDMARK_NUM, FEAT), jnp.float32) * 0.05
    b_dec = jax.random.normal(ks[10], (LANDMARK_NUM, 3), jnp.float32) * 0.01
    # size_tensor_inv example (normalized so predicts stay O(1))
    size_inv = jnp.array([[767.0, 767.0, 575.0]], jnp.float32) / 768.0

    params = (w_share, b_share, w_head, b_head, wx, wy, wz, b_dec)

    out = fine_lstm_forward(coarse, enc_feat, glob_feat, params, size_inv)
    out = jax.block_until_ready(out)

    ref = fine_lstm_ref(coarse, enc_feat, glob_feat, params, size_inv)
    assert out.shape == (ITERATION, LANDMARK_NUM, 3), out.shape
    # Tolerance covers the bf16 gate-matmul cast (everything else is exact f32).
    max_err = float(jnp.max(jnp.abs(out - ref)))
    assert max_err < 5e-3, max_err

    print("KERNEL_OK")
</pallas_src>

<mosaic_0001>
module attributes {stable_mosaic.version = 11 : i64} {
  func.func @fine_lstm_kernel(%arg0: i32, %arg1: memref<3x8x640xf32, #tpu.memory_space<vmem>>, %arg2: memref<8x3xf32, #tpu.memory_space<vmem>>, %arg3: memref<640x256xbf16, #tpu.memory_space<vmem>>, %arg4: memref<1x256xf32, #tpu.memory_space<vmem>>, %arg5: memref<8x256xf32, #tpu.memory_space<vmem>>, %arg6: memref<8x1xf32, #tpu.memory_space<vmem>>, %arg7: memref<8x3x640xf32, #tpu.memory_space<vmem>>, %arg8: memref<8x3xf32, #tpu.memory_space<vmem>>, %arg9: memref<1x3xf32, #tpu.memory_space<vmem>>, %arg10: memref<3x8x3xf32, #tpu.memory_space<vmem>>) attributes {dimension_semantics = [#tpu.dimension_semantics<arbitrary>], iteration_bounds = array<i64: 1>, scalar_prefetch = 0 : i64, scratch_operands = 0 : i64, tpu.core_type = #tpu.core_type<tc>, window_params = [{pipeline_mode = #tpu.pipeline_mode<synchronous>, transform_indices = @transform_0, window_bounds = array<i64: 3, 8, 640>}, {pipeline_mode = #tpu.pipeline_mode<synchronous>, transform_indices = @transform_1, window_bounds = array<i64: 8, 3>}, {pipeline_mode = #tpu.pipeline_mode<synchronous>, transform_indices = @transform_2, window_bounds = array<i64: 640, 256>}, {pipeline_mode = #tpu.pipeline_mode<synchronous>, transform_indices = @transform_3, window_bounds = array<i64: 1, 256>}, {pipeline_mode = #tpu.pipeline_mode<synchronous>, transform_indices = @transform_4, window_bounds = array<i64: 8, 256>}, {pipeline_mode = #tpu.pipeline_mode<synchronous>, transform_indices = @transform_5, window_bounds = array<i64: 8, 1>}, {pipeline_mode = #tpu.pipeline_mode<synchronous>, transform_indices = @transform_6, window_bounds = array<i64: 8, 3, 640>}, {pipeline_mode = #tpu.pipeline_mode<synchronous>, transform_indices = @transform_7, window_bounds = array<i64: 8, 3>}, {pipeline_mode = #tpu.pipeline_mode<synchronous>, transform_indices = @transform_8, window_bounds = array<i64: 1, 3>}, {pipeline_mode = #tpu.pipeline_mode<synchronous>, transform_indices = @transform_9, window_bounds = array<i64: 3, 8, 3>}]} {
    %c0 = arith.constant 0 : index
    %c0_0 = arith.constant 0 : index
    %0 = vector.load %arg2[%c0, %c0_0] : memref<8x3xf32, #tpu.memory_space<vmem>>, vector<8x3xf32>
    %c0_1 = arith.constant 0 : index
    %c0_2 = arith.constant 0 : index
    %1 = vector.load %arg3[%c0_1, %c0_2] : memref<640x256xbf16, #tpu.memory_space<vmem>>, vector<640x256xbf16>
    %c0_3 = arith.constant 0 : index
    %c0_4 = arith.constant 0 : index
    %2 = vector.load %arg4[%c0_3, %c0_4] : memref<1x256xf32, #tpu.memory_space<vmem>>, vector<1x256xf32>
    %c0_5 = arith.constant 0 : index
    %c0_6 = arith.constant 0 : index
    %3 = vector.load %arg6[%c0_5, %c0_6] : memref<8x1xf32, #tpu.memory_space<vmem>>, vector<8x1xf32>
    %c0_7 = arith.constant 0 : index
    %c0_8 = arith.constant 0 : index
    %4 = vector.load %arg5[%c0_7, %c0_8] : memref<8x256xf32, #tpu.memory_space<vmem>>, vector<8x256xf32>
    %c0_9 = arith.constant 0 : index
    %c0_10 = arith.constant 0 : index
    %5 = vector.load %arg5[%c0_9, %c0_10] : memref<8x256xf32, #tpu.memory_space<vmem>>, vector<8x256xf32>
    %6 = tpu.concatenate %4, %5 in 0 : vector<8x256xf32>, vector<8x256xf32> -> vector<16x256xf32>
    %c0_11 = arith.constant 0 : index
    %c0_12 = arith.constant 0 : index
    %c0_13 = arith.constant 0 : index
    %7 = vector.load %arg7[%c0_11, %c0_12, %c0_13] : memref<8x3x640xf32, #tpu.memory_space<vmem>>, vector<8x3x640xf32>
    %c0_14 = arith.constant 0 : index
    %c0_15 = arith.constant 0 : index
    %8 = vector.load %arg8[%c0_14, %c0_15] : memref<8x3xf32, #tpu.memory_space<vmem>>, vector<8x3xf32>
    %c0_16 = arith.constant 0 : index
    %c0_17 = arith.constant 0 : index
    %9 = vector.load %arg9[%c0_16, %c0_17] : memref<1x3xf32, #tpu.memory_space<vmem>>, vector<1x3xf32>
    %c0_18 = arith.constant 0 : index
    %c0_19 = arith.constant 0 : index
    %c0_20 = arith.constant 0 : index
    %10 = vector.load %arg1[%c0_18, %c0_19, %c0_20] : memref<3x8x640xf32, #tpu.memory_space<vmem>>, vector<1x8x640xf32>
    %11 = vector.shape_cast %10 : vector<1x8x640xf32> to vector<8x640xf32>
    %12 = vector.shape_cast %11 : vector<8x640xf32> to vector<8x1x640xf32>
    %13 = vector.broadcast %12 : vector<8x1x640xf32> to vector<8x3x640xf32>
    %14 = arith.mulf %13, %7 : vector<8x3x640xf32>
    %cst = arith.constant dense<0.000000e+00> : vector<8x3xf32>
    %15 = vector.multi_reduction <add>, %14, %cst [2] : vector<8x3x640xf32> to vector<8x3xf32>
    %16 = arith.addf %15, %8 : vector<8x3xf32>
    %17 = vector.broadcast %9 : vector<1x3xf32> to vector<8x3xf32>
    %18 = arith.mulf %16, %17 : vector<8x3xf32>
    %19 = arith.addf %18, %0 : vector<8x3xf32>
    %c0_21 = arith.constant 0 : index
    %c0_22 = arith.constant 0 : index
    %c0_23 = arith.constant 0 : index
    %20 = vector.load %arg10[%c0_21, %c0_22, %c0_23] : memref<3x8x3xf32, #tpu.memory_space<vmem>>, vector<1x8x3xf32>
    %21 = vector.shape_cast %20 : vector<1x8x3xf32> to vector<8x3xf32>
    %22 = vector.shape_cast %19 : vector<8x3xf32> to vector<1x8x3xf32>
    tpu.vector_store %arg10[%c0_21, %c0_22, %c0_23], %22 {strides = array<i32>} : memref<3x8x3xf32, #tpu.memory_space<vmem>>, vector<1x8x3xf32>,
    %c1 = arith.constant 1 : index
    %c0_24 = arith.constant 0 : index
    %c0_25 = arith.constant 0 : index
    %23 = vector.load %arg1[%c1, %c0_24, %c0_25] : memref<3x8x640xf32, #tpu.memory_space<vmem>>, vector<1x8x640xf32>
    %24 = vector.shape_cast %23 : vector<1x8x640xf32> to vector<8x640xf32>
    %25 = tpu.concatenate %11, %24 in 0 : vector<8x640xf32>, vector<8x640xf32> -> vector<16x640xf32>
    %26 = arith.truncf %25 : vector<16x640xf32> to vector<16x640xbf16>
    %cst_26 = arith.constant dense<0.000000e+00> : vector<16x256xf32>
    %27 = tpu.matmul %26, %1, %cst_26 {dimension_numbers = #tpu.dot_dimension_numbers<[1], [0], [0], [1], [0, 0, 1, 1], [], []>} : vector<16x640xbf16>, vector<640x256xbf16>, vector<16x256xf32> -> vector<16x256xf32>
    %28 = vector.broadcast %2 : vector<1x256xf32> to vector<16x256xf32>
    %29 = arith.addf %27, %28 : vector<16x256xf32>
    %30 = math.tanh %29 : vector<16x256xf32>
    %31 = arith.mulf %30, %6 : vector<16x256xf32>
    %cst_27 = arith.constant dense<0.000000e+00> : vector<16xf32>
    %32 = vector.multi_reduction <add>, %31, %cst_27 [1] : vector<16x256xf32> to vector<16xf32>
    %33 = vector.shape_cast %32 : vector<16xf32> to vector<16x1xf32>
    %34 = vector.extract_strided_slice %33 {offsets = [0, 0], sizes = [8, 1], strides = [1, 1]} : vector<16x1xf32> to vector<8x1xf32>
    %35 = arith.addf %34, %3 : vector<8x1xf32>
    %36 = vector.extract_strided_slice %33 {offsets = [8, 0], sizes = [8, 1], strides = [1, 1]} : vector<16x1xf32> to vector<8x1xf32>
    %37 = arith.addf %36, %3 : vector<8x1xf32>
    %38 = arith.subf %35, %37 : vector<8x1xf32>
    %39 = arith.negf %38 : vector<8x1xf32>
    %40 = math.exp %39 : vector<8x1xf32>
    %cst_28 = arith.constant 1.000000e+00 : f32
    %41 = vector.broadcast %cst_28 : f32 to vector<8x1xf32>
    %42 = arith.addf %41, %40 : vector<8x1xf32>
    %43 = arith.divf %41, %42 : vector<8x1xf32>
    %cst_29 = arith.constant 1.000000e+00 : f32
    %44 = vector.broadcast %cst_29 : f32 to vector<8x1xf32>
    %45 = arith.subf %44, %43 : vector<8x1xf32>
    %46 = vector.broadcast %43 : vector<8x1xf32> to vector<8x640xf32>
    %47 = arith.mulf %11, %46 : vector<8x640xf32>
    %48 = vector.broadcast %45 : vector<8x1xf32> to vector<8x640xf32>
    %49 = arith.mulf %24, %48 : vector<8x640xf32>
    %50 = arith.addf %47, %49 : vector<8x640xf32>
    %51 = vector.broadcast %43 : vector<8x1xf32> to vector<8x3xf32>
    %52 = arith.mulf %0, %51 : vector<8x3xf32>
    %53 = vector.broadcast %45 : vector<8x1xf32> to vector<8x3xf32>
    %54 = arith.mulf %19, %53 : vector<8x3xf32>
    %55 = arith.addf %52, %54 : vector<8x3xf32>
    %56 = vector.shape_cast %50 : vector<8x640xf32> to vector<8x1x640xf32>
    %57 = vector.broadcast %56 : vector<8x1x640xf32> to vector<8x3x640xf32>
    %58 = arith.mulf %57, %7 : vector<8x3x640xf32>
    %cst_30 = arith.constant dense<0.000000e+00> : vector<8x3xf32>
    %59 = vector.multi_reduction <add>, %58, %cst_30 [2] : vector<8x3x640xf32> to vector<8x3xf32>
    %60 = arith.addf %59, %8 : vector<8x3xf32>
    %61 = vector.broadcast %9 : vector<1x3xf32> to vector<8x3xf32>
    %62 = arith.mulf %60, %61 : vector<8x3xf32>
    %63 = arith.addf %62, %55 : vector<8x3xf32>
    %c1_31 = arith.constant 1 : index
    %c0_32 = arith.constant 0 : index
    %c0_33 = arith.constant 0 : index
    %64 = vector.load %arg10[%c1_31, %c0_32, %c0_33] : memref<3x8x3xf32, #tpu.memory_space<vmem>>, vector<1x8x3xf32>
    %65 = vector.shape_cast %64 : vector<1x8x3xf32> to vector<8x3xf32>
    %66 = vector.shape_cast %63 : vector<8x3xf32> to vector<1x8x3xf32>
    tpu.vector_store %arg10[%c1_31, %c0_32, %c0_33], %66 {strides = array<i32>} : memref<3x8x3xf32, #tpu.memory_space<vmem>>, vector<1x8x3xf32>,
    %c2 = arith.constant 2 : index
    %c0_34 = arith.constant 0 : index
    %c0_35 = arith.constant 0 : index
    %67 = vector.load %arg1[%c2, %c0_34, %c0_35] : memref<3x8x640xf32, #tpu.memory_space<vmem>>, vector<1x8x640xf32>
    %68 = vector.shape_cast %67 : vector<1x8x640xf32> to vector<8x640xf32>
    %69 = tpu.concatenate %50, %68 in 0 : vector<8x640xf32>, vector<8x640xf32> -> vector<16x640xf32>
    %70 = arith.truncf %69 : vector<16x640xf32> to vector<16x640xbf16>
    %cst_36 = arith.constant dense<0.000000e+00> : vector<16x256xf32>
    %71 = tpu.matmul %70, %1, %cst_36 {dimension_numbers = #tpu.dot_dimension_numbers<[1], [0], [0], [1], [0, 0, 1, 1], [], []>} : vector<16x640xbf16>, vector<640x256xbf16>, vector<16x256xf32> -> vector<16x256xf32>
    %72 = vector.broadcast %2 : vector<1x256xf32> to vector<16x256xf32>
    %73 = arith.addf %71, %72 : vector<16x256xf32>
    %74 = math.tanh %73 : vector<16x256xf32>
    %75 = arith.mulf %74, %6 : vector<16x256xf32>
    %cst_37 = arith.constant dense<0.000000e+00> : vector<16xf32>
    %76 = vector.multi_reduction <add>, %75, %cst_37 [1] : vector<16x256xf32> to vector<16xf32>
    %77 = vector.shape_cast %76 : vector<16xf32> to vector<16x1xf32>
    %78 = vector.extract_strided_slice %77 {offsets = [0, 0], sizes = [8, 1], strides = [1, 1]} : vector<16x1xf32> to vector<8x1xf32>
    %79 = arith.addf %78, %3 : vector<8x1xf32>
    %80 = vector.extract_strided_slice %77 {offsets = [8, 0], sizes = [8, 1], strides = [1, 1]} : vector<16x1xf32> to vector<8x1xf32>
    %81 = arith.addf %80, %3 : vector<8x1xf32>
    %82 = arith.subf %79, %81 : vector<8x1xf32>
    %83 = arith.negf %82 : vector<8x1xf32>
    %84 = math.exp %83 : vector<8x1xf32>
    %cst_38 = arith.constant 1.000000e+00 : f32
    %85 = vector.broadcast %cst_38 : f32 to vector<8x1xf32>
    %86 = arith.addf %85, %84 : vector<8x1xf32>
    %87 = arith.divf %85, %86 : vector<8x1xf32>
    %cst_39 = arith.constant 1.000000e+00 : f32
    %88 = vector.broadcast %cst_39 : f32 to vector<8x1xf32>
    %89 = arith.subf %88, %87 : vector<8x1xf32>
    %90 = vector.broadcast %87 : vector<8x1xf32> to vector<8x640xf32>
    %91 = arith.mulf %50, %90 : vector<8x640xf32>
    %92 = vector.broadcast %89 : vector<8x1xf32> to vector<8x640xf32>
    %93 = arith.mulf %68, %92 : vector<8x640xf32>
    %94 = arith.addf %91, %93 : vector<8x640xf32>
    %95 = vector.broadcast %87 : vector<8x1xf32> to vector<8x3xf32>
    %96 = arith.mulf %55, %95 : vector<8x3xf32>
    %97 = vector.broadcast %89 : vector<8x1xf32> to vector<8x3xf32>
    %98 = arith.mulf %63, %97 : vector<8x3xf32>
    %99 = arith.addf %96, %98 : vector<8x3xf32>
    %100 = vector.shape_cast %94 : vector<8x640xf32> to vector<8x1x640xf32>
    %101 = vector.broadcast %100 : vector<8x1x640xf32> to vector<8x3x640xf32>
    %102 = arith.mulf %101, %7 : vector<8x3x640xf32>
    %cst_40 = arith.constant dense<0.000000e+00> : vector<8x3xf32>
    %103 = vector.multi_reduction <add>, %102, %cst_40 [2] : vector<8x3x640xf32> to vector<8x3xf32>
    %104 = arith.addf %103, %8 : vector<8x3xf32>
    %105 = vector.broadcast %9 : vector<1x3xf32> to vector<8x3xf32>
    %106 = arith.mulf %104, %105 : vector<8x3xf32>
    %107 = arith.addf %106, %99 : vector<8x3xf32>
    %c2_41 = arith.constant 2 : index
    %c0_42 = arith.constant 0 : index
    %c0_43 = arith.constant 0 : index
    %108 = vector.load %arg10[%c2_41, %c0_42, %c0_43] : memref<3x8x3xf32, #tpu.memory_space<vmem>>, vector<1x8x3xf32>
    %109 = vector.shape_cast %108 : vector<1x8x3xf32> to vector<8x3xf32>
    %110 = vector.shape_cast %107 : vector<8x3xf32> to vector<1x8x3xf32>
    tpu.vector_store %arg10[%c2_41, %c0_42, %c0_43], %110 {strides = array<i32>} : memref<3x8x3xf32, #tpu.memory_space<vmem>>, vector<1x8x3xf32>,
    return
  }
  func.func @transform_0(%arg0: i32) -> (i32, i32, i32) {
    %c0_i32 = arith.constant 0 : i32
    %c0_i32_0 = arith.constant 0 : i32
    %c0_i32_1 = arith.constant 0 : i32
    %c0_i32_2 = arith.constant 0 : i32
    return %c0_i32, %c0_i32_0, %c0_i32_1 : i32, i32, i32
  }
  func.func @transform_1(%arg0: i32) -> (i32, i32) {
    %c0_i32 = arith.constant 0 : i32
    %c0_i32_0 = arith.constant 0 : i32
    %c0_i32_1 = arith.constant 0 : i32
    return %c0_i32, %c0_i32_0 : i32, i32
  }
  func.func @transform_2(%arg0: i32) -> (i32, i32) {
    %c0_i32 = arith.constant 0 : i32
    %c0_i32_0 = arith.constant 0 : i32
    %c0_i32_1 = arith.constant 0 : i32
    return %c0_i32, %c0_i32_0 : i32, i32
  }
  func.func @transform_3(%arg0: i32) -> (i32, i32) {
    %c0_i32 = arith.constant 0 : i32
    %c0_i32_0 = arith.constant 0 : i32
    %c0_i32_1 = arith.constant 0 : i32
    return %c0_i32, %c0_i32_0 : i32, i32
  }
  func.func @transform_4(%arg0: i32) -> (i32, i32) {
    %c0_i32 = arith.constant 0 : i32
    %c0_i32_0 = arith.constant 0 : i32
    %c0_i32_1 = arith.constant 0 : i32
    return %c0_i32, %c0_i32_0 : i32, i32
  }
  func.func @transform_5(%arg0: i32) -> (i32, i32) {
    %c0_i32 = arith.constant 0 : i32
    %c0_i32_0 = arith.constant 0 : i32
    %c0_i32_1 = arith.constant 0 : i32
    return %c0_i32, %c0_i32_0 : i32, i32
  }
  func.func @transform_6(%arg0: i32) -> (i32, i32, i32) {
    %c0_i32 = arith.constant 0 : i32
    %c0_i32_0 = arith.constant 0 : i32
    %c0_i32_1 = arith.constant 0 : i32
    %c0_i32_2 = arith.constant 0 : i32
    return %c0_i32, %c0_i32_0, %c0_i32_1 : i32, i32, i32
  }
  func.func @transform_7(%arg0: i32) -> (i32, i32) {
    %c0_i32 = arith.constant 0 : i32
    %c0_i32_0 = arith.constant 0 : i32
    %c0_i32_1 = arith.constant 0 : i32
    return %c0_i32, %c0_i32_0 : i32, i32
  }
  func.func @transform_8(%arg0: i32) -> (i32, i32) {
    %c0_i32 = arith.constant 0 : i32
    %c0_i32_0 = arith.constant 0 : i32
    %c0_i32_1 = arith.constant 0 : i32
    return %c0_i32, %c0_i32_0 : i32, i32
  }
  func.func @transform_9(%arg0: i32) -> (i32, i32, i32) {
    %c0_i32 = arith.constant 0 : i32
    %c0_i32_0 = arith.constant 0 : i32
    %c0_i32_1 = arith.constant 0 : i32
    %c0_i32_2 = arith.constant 0 : i32
    return %c0_i32, %c0_i32_0, %c0_i32_1 : i32, i32, i32
  }
}

</mosaic_0001>

<llo_original>
// kernel: tpu_custom_call.1
$region0: #{tpu_custom_call.1}
  #allocation0 [shape = 'u32[]', space=smem, size = 0x4, offset = 0x4, fixed_abs, tag = 'smem constant byte address 0x4 - core index']
  #allocation1 [shape = 'u32[144,128]{1,0:T(1,128)}', space=vmem, size = 0x12000, scoped, tag = 'internal scratch']
  %s0 = inlined_call_operand.vmem [shape: f32[3,8,640], index: 0, kind: input, shape index: {}]
  %s1 = inlined_call_operand.vmem [shape: f32[8,3], index: 1, kind: input, shape index: {}]
  %s2 = inlined_call_operand.hbm [shape: bf16[640,256], index: 2, kind: input, shape index: {}]
  %s3 = inlined_call_operand.vmem [shape: f32[1,256], index: 3, kind: input, shape index: {}]
  %s4 = inlined_call_operand.vmem [shape: f32[8,256], index: 4, kind: input, shape index: {}]
  %s5 = inlined_call_operand.vmem [shape: f32[8,1], index: 5, kind: input, shape index: {}]
  %s6 = inlined_call_operand.vmem [shape: f32[8,3,640], index: 6, kind: input, shape index: {}]
  %s7 = inlined_call_operand.vmem [shape: f32[8,3], index: 7, kind: input, shape index: {}]
  %s8 = inlined_call_operand.vmem [shape: f32[1,3], index: 8, kind: input, shape index: {}]
  %s9 = inlined_call_operand.vmem [shape: f32[3,8,3], index: 9, kind: output, shape index: {}]
  %s10 = sld [smem:[#allocation0]]
  $region50: #{tpu_custom_call.1} parent=0
    _
  %s12 = ssub.s32 1, %s10
  %s13 = scalar_select 0, %s12, %s10
  $region1: #{tpu_custom_call.1} parent=0
    #allocation2 [shape = 'u8[327680]{0}', space=vmem, size = 0x50000, scoped, tag = 'input window, operand 2, single buffered']
    #allocation3 [shape = 's32[1]{0}', space=sflag, size = 0x4, scoped, tag = 'scoped memory for tpu_custom_call.1']
    %14 = vsyncpa [#allocation3], 0
    // Predicated region
    $region2: #{tpu_custom_call.1} parent=1 // pred_check
      _
    $region3: #{tpu_custom_call.1} parent=1 // pred_check_branch
      %16 = sbr.rel (0) target = $region5
    $region4: #{tpu_custom_call.1} parent=1 // pred_region
      _
    $region5: #{tpu_custom_call.1} parent=1 // pred_fallthru
      _
    // Predicated region
    $region6: #{tpu_custom_call.1} parent=1 // pred_check
      _
    $region7: #{tpu_custom_call.1} parent=1 // pred_check_branch
      %18 = sbr.rel (0) target = $region9
    $region8: #{tpu_custom_call.1} parent=1 // pred_region
      _
    $region9: #{tpu_custom_call.1} parent=1 // pred_fallthru
      _
    // Predicated region
    $region10: #{tpu_custom_call.1} parent=1 // pred_check
      _
    $region11: #{tpu_custom_call.1} parent=1 // pred_check_branch
      %20 = sbr.rel (0) target = $region13
    $region12: #{tpu_custom_call.1} parent=1 // pred_region
      %s22 = ssub.s32 10240, 10240
      %23 = vsyncadd [#allocation3], %s22
      %s24 = sshll.u32 [#allocation2], 4
      %s25 = int_to_ptr.vmem [resolvable:$true] %s24
      %30 = dma.hbm_to_vmem [thread:$0]  %s2, 10240, %s25, [#allocation3], 128, 128, 8
    $region13: #{tpu_custom_call.1} parent=1 // pred_fallthru
      _
    // Predicated region
    $region14: #{tpu_custom_call.1} parent=1 // pred_check
      _
    $region15: #{tpu_custom_call.1} parent=1 // pred_check_branch
      %32 = sbr.rel (0) target = $region17
    $region16: #{tpu_custom_call.1} parent=1 // pred_region
      _
    $region17: #{tpu_custom_call.1} parent=1 // pred_fallthru
      _
    // Predicated region
    $region18: #{tpu_custom_call.1} parent=1 // pred_check
      _
    $region19: #{tpu_custom_call.1} parent=1 // pred_check_branch
      %34 = sbr.rel (0) target = $region21
    $region20: #{tpu_custom_call.1} parent=1 // pred_region
      _
    $region21: #{tpu_custom_call.1} parent=1 // pred_fallthru
      _
    // Predicated region
    $region22: #{tpu_custom_call.1} parent=1 // pred_check
      _
    $region23: #{tpu_custom_call.1} parent=1 // pred_check_branch
      %36 = sbr.rel (0) target = $region25
    $region24: #{tpu_custom_call.1} parent=1 // pred_region
      _
    $region25: #{tpu_custom_call.1} parent=1 // pred_fallthru
      _
    // Predicated region
    $region26: #{tpu_custom_call.1} parent=1 // pred_check
      _
    $region27: #{tpu_custom_call.1} parent=1 // pred_check_branch
      %38 = sbr.rel (0) target = $region29
    $region28: #{tpu_custom_call.1} parent=1 // pred_region
      _
    $region29: #{tpu_custom_call.1} parent=1 // pred_fallthru
      _
    // Predicated region
    $region30: #{tpu_custom_call.1} parent=1 // pred_check
      _
    $region31: #{tpu_custom_call.1} parent=1 // pred_check_branch
      %40 = sbr.rel (0) target = $region33
    $region32: #{tpu_custom_call.1} parent=1 // pred_region
      _
    $region33: #{tpu_custom_call.1} parent=1 // pred_fallthru
      _
    // Predicated region
    $region34: #{tpu_custom_call.1} parent=1 // pred_check
      _
    $region35: #{tpu_custom_call.1} parent=1 // pred_check_branch
      %42 = sbr.rel (0) target = $region37
    $region36: #{tpu_custom_call.1} parent=1 // pred_region
      _
    $region37: #{tpu_custom_call.1} parent=1 // pred_fallthru
      _
    // Predicated region
    $region38: #{tpu_custom_call.1} parent=1 // pred_check
      _
    $region39: #{tpu_custom_call.1} parent=1 // pred_check_branch
      %44 = sbr.rel (0) target = $region41
    $region40: #{tpu_custom_call.1} parent=1 // pred_region
      %45 = dma.done [#allocation3], 10240
    $region41: #{tpu_custom_call.1} parent=1 // pred_fallthru
      _
    %v47 = vld [vmem:[%s1] sm:$0xff]
    %v48 = vld [vmem:[#allocation2] sm:$0xff]
    %v49 = vld [vmem:[#allocation2 + $0x8] sm:$0xff]
    %v50 = vld [vmem:[#allocation2 + $0x10] sm:$0xff]
    %v51 = vld [vmem:[#allocation2 + $0x18] sm:$0xff]
    %v52 = vld [vmem:[#allocation2 + $0x20] sm:$0xff]
    %v53 = vld [vmem:[#allocation2 + $0x28] sm:$0xff]
    %v54 = vld [vmem:[#allocation2 + $0x30] sm:$0xff]
    %v55 = vld [vmem:[#allocation2 + $0x38] sm:$0xff]
    %v56 = vld [vmem:[#allocation2 + $0x40] sm:$0xff]
    %v57 = vld [vmem:[#allocation2 + $0x48] sm:$0xff]
    %v58 = vld [vmem:[#allocation2 + $0x50] sm:$0xff]
    %v59 = vld [vmem:[#allocation2 + $0x58] sm:$0xff]
    %v60 = vld [vmem:[#allocation2 + $0x60] sm:$0xff]
    %v61 = vld [vmem:[#allocation2 + $0x68] sm:$0xff]
    %v62 = vld [vmem:[#allocation2 + $0x70] sm:$0xff]
    %v63 = vld [vmem:[#allocation2 + $0x78] sm:$0xff]
    %v64 = vld [vmem:[#allocation2 + $0x80] sm:$0xff]
    %v65 = vld [vmem:[#allocation2 + $0x88] sm:$0xff]
    %v66 = vld [vmem:[#allocation2 + $0x90] sm:$0xff]
    %v67 = vld [vmem:[#allocation2 + $0x98] sm:$0xff]
    %v68 = vld [vmem:[#allocation2 + $0xa0] sm:$0xff]
    %v69 = vld [vmem:[#allocation2 + $0xa8] sm:$0xff]
    %v70 = vld [vmem:[#allocation2 + $0xb0] sm:$0xff]
    %v71 = vld [vmem:[#allocation2 + $0xb8] sm:$0xff]
    %v72 = vld [vmem:[#allocation2 + $0xc0] sm:$0xff]
    %v73 = vld [vmem:[#allocation2 + $0xc8] sm:$0xff]
    %v74 = vld [vmem:[#allocation2 + $0xd0] sm:$0xff]
    %v75 = vld [vmem:[#allocation2 + $0xd8] sm:$0xff]
    %v76 = vld [vmem:[#allocation2 + $0xe0] sm:$0xff]
    %v77 = vld [vmem:[#allocation2 + $0xe8] sm:$0xff]
    %v78 = vld [vmem:[#allocation2 + $0xf0] sm:$0xff]
    %v79 = vld [vmem:[#allocation2 + $0xf8] sm:$0xff]
    %v80 = vld [vmem:[#allocation2 + $0x100] sm:$0xff]
    %v81 = vld [vmem:[#allocation2 + $0x108] sm:$0xff]
    %v82 = vld [vmem:[#allocation2 + $0x110] sm:$0xff]
    %v83 = vld [vmem:[#allocation2 + $0x118] sm:$0xff]
    %v84 = vld [vmem:[#allocation2 + $0x120] sm:$0xff]
    %v85 = vld [vmem:[#allocation2 + $0x128] sm:$0xff]
    %v86 = vld [vmem:[#allocation2 + $0x130] sm:$0xff]
    %v87 = vld [vmem:[#allocation2 + $0x138] sm:$0xff]
    %v88 = vld [vmem:[#allocation2 + $0x140] sm:$0xff]
    %v89 = vld [vmem:[#allocation2 + $0x148] sm:$0xff]
    %v90 = vld [vmem:[#allocation2 + $0x150] sm:$0xff]
    %v91 = vld [vmem:[#allocation2 + $0x158] sm:$0xff]
    %v92 = vld [vmem:[#allocation2 + $0x160] sm:$0xff]
    %v93 = vld [vmem:[#allocation2 + $0x168] sm:$0xff]
    %v94 = vld [vmem:[#allocation2 + $0x170] sm:$0xff]
    %v95 = vld [vmem:[#allocation2 + $0x178] sm:$0xff]
    %v96 = vld [vmem:[#allocation2 + $0x180] sm:$0xff]
    %v97 = vld [vmem:[#allocation2 + $0x188] sm:$0xff]
    %v98 = vld [vmem:[#allocation2 + $0x190] sm:$0xff]
    %v99 = vld [vmem:[#allocation2 + $0x198] sm:$0xff]
    %v100 = vld [vmem:[#allocation2 + $0x1a0] sm:$0xff]
    %v101 = vld [vmem:[#allocation2 + $0x1a8] sm:$0xff]
    %v102 = vld [vmem:[#allocation2 + $0x1b0] sm:$0xff]
    %v103 = vld [vmem:[#allocation2 + $0x1b8] sm:$0xff]
    %v104 = vld [vmem:[#allocation2 + $0x1c0] sm:$0xff]
    %v105 = vld [vmem:[#allocation2 + $0x1c8] sm:$0xff]
    %v106 = vld [vmem:[#allocation2 + $0x1d0] sm:$0xff]
    %v107 = vld [vmem:[#allocation2 + $0x1d8] sm:$0xff]
    %v108 = vld [vmem:[#allocation2 + $0x1e0] sm:$0xff]
    %v109 = vld [vmem:[#allocation2 + $0x1e8] sm:$0xff]
    %v110 = vld [vmem:[#allocation2 + $0x1f0] sm:$0xff]
    %v111 = vld [vmem:[#allocation2 + $0x1f8] sm:$0xff]
    %v112 = vld [vmem:[#allocation2 + $0x200] sm:$0xff]
    %v113 = vld [vmem:[#allocation2 + $0x208] sm:$0xff]
    %v114 = vld [vmem:[#allocation2 + $0x210] sm:$0xff]
    %v115 = vld [vmem:[#allocation2 + $0x218] sm:$0xff]
    %v116 = vld [vmem:[#allocation2 + $0x220] sm:$0xff]
    %v117 = vld [vmem:[#allocation2 + $0x228] sm:$0xff]
    %v118 = vld [vmem:[#allocation2 + $0x230] sm:$0xff]
    %v119 = vld [vmem:[#allocation2 + $0x238] sm:$0xff]
    %v120 = vld [vmem:[#allocation2 + $0x240] sm:$0xff]
    %v121 = vld [vmem:[#allocation2 + $0x248] sm:$0xff]
    %v122 = vld [vmem:[#allocation2 + $0x250] sm:$0xff]
    %v123 = vld [vmem:[#allocation2 + $0x258] sm:$0xff]
    %v124 = vld [vmem:[#allocation2 + $0x260] sm:$0xff]
    %v125 = vld [vmem:[#allocation2 + $0x268] sm:$0xff]
    %v126 = vld [vmem:[#allocation2 + $0x270] sm:$0xff]
    %v127 = vld [vmem:[#allocation2 + $0x278] sm:$0xff]
    %v128 = vld [vmem:[%s3] sm:$0x3]
    %v129 = vld [vmem:[%s5] sm:$0xff]
    %v130 = vld [vmem:[%s4] sm:$0xff]
    %v131 = vld [vmem:[%s4 + $0x8] sm:$0xff]
    %v132 = vld [vmem:[%s6] sm:$0x77]
    %v133 = vld [vmem:[%s6 + $0x8] sm:$0x77]
    %v134 = vld [vmem:[%s6 + $0x10] sm:$0x7]
    %v135 = vld [vmem:[%s6 + $0x14] sm:$0x77]
    %v136 = vld [vmem:[%s6 + $0x1c] sm:$0x77]
    %v137 = vld [vmem:[%s6 + $0x24] sm:$0x7]
    %v138 = vld [vmem:[%s6 + $0x28] sm:$0x77]
    %v139 = vld [vmem:[%s6 + $0x30] sm:$0x77]
    %v140 = vld [vmem:[%s6 + $0x38] sm:$0x7]
    %v141 = vld [vmem:[%s6 + $0x3c] sm:$0x77]
    %v142 = vld [vmem:[%s6 + $0x44] sm:$0x77]
    %v143 = vld [vmem:[%s6 + $0x4c] sm:$0x7]
    %v144 = vld [vmem:[%s6 + $0x50] sm:$0x77]
    %v145 = vld [vmem:[%s6 + $0x58] sm:$0x77]
    %v146 = vld [vmem:[%s6 + $0x60] sm:$0x7]
    %v147 = vld [vmem:[%s6 + $0x64] sm:$0x77]
    %v148 = vld [vmem:[%s6 + $0x6c] sm:$0x77]
    %v149 = vld [vmem:[%s6 + $0x74] sm:$0x7]
    %v150 = vld [vmem:[%s6 + $0x78] sm:$0x77]
    %v151 = vld [vmem:[%s6 + $0x80] sm:$0x77]
    %v152 = vld [vmem:[%s6 + $0x88] sm:$0x7]
    %v153 = vld [vmem:[%s6 + $0x8c] sm:$0x77]
    %v154 = vld [vmem:[%s6 + $0x94] sm:$0x77]
    %v155 = vld [vmem:[%s6 + $0x9c] sm:$0x7]
    %v156 = vld [vmem:[%s7] sm:$0xff]
    %v157 = vld [vmem:[%s8] sm:$0x1]
    %v158 = vld [vmem:[%s0] sm:$0xff]
    %v159 = vld [vmem:[%s0 + $0x8] sm:$0xff]
    %v160 = vld [vmem:[%s0 + $0x10] sm:$0xff]
    %v161 = vld [vmem:[%s0 + $0x18] sm:$0xff]
    %v162 = vld [vmem:[%s0 + $0x20] sm:$0xff]
    %v168 = vcombine.low %v158, %v159
    %v169 = vcombine.high %v158, %v159
    %v170 = vcombine.low %v160, %v161
    %v171 = vcombine.high %v160, %v161
    %v172 = vcombine.high %v162, %v162
    %v174 = vunpack.c.l.s4 1966171168
    %v175 = vunpack.c.0.s8 %v174
    %v176 = vlaneseq
    %v177 = vshrl.u32 %v176, 7
    %v178 = vsub.s32 %v175, %v177
    %v179 = vrot.slane %v168, %v178
    %v181 = vunpack.c.l.s4 1966171168
    %v182 = vunpack.c.0.s8 %v181
    %v183 = vlaneseq
    %v184 = vshrl.u32 %v183, 7
    %v185 = vsub.s32 %v182, %v184
    %v186 = vrot.slane %v169, %v185
    %v188 = vunpack.c.l.s4 1966171168
    %v189 = vunpack.c.0.s8 %v188
    %v190 = vlaneseq
    %v191 = vshrl.u32 %v190, 7
    %v192 = vsub.s32 %v189, %v191
    %v193 = vrot.slane %v170, %v192
    %v195 = vunpack.c.l.s4 1966171168
    %v196 = vunpack.c.0.s8 %v195
    %v197 = vlaneseq
    %v198 = vshrl.u32 %v197, 7
    %v199 = vsub.s32 %v196, %v198
    %v200 = vrot.slane %v171, %v199
    %v202 = vunpack.c.l.s4 1966171168
    %v203 = vunpack.c.0.s8 %v202
    %v204 = vlaneseq
    %v205 = vshrl.u32 %v204, 7
    %v206 = vsub.s32 %v203, %v205
    %v207 = vrot.slane %v162, %v206
    %v209 = vunpack.c.l.s4 1966171168
    %v210 = vunpack.c.0.s8 %v209
    %v211 = vlaneseq
    %v212 = vshrl.u32 %v211, 7
    %v213 = vsub.s32 %v210, %v212
    %v214 = vrot.slane %v172, %v213
    %v215 = vcombine.low %v179, %v193
    %v216 = vcombine.high %v179, %v193
    %v217 = vcombine.low %v186, %v200
    %v218 = vcombine.high %v186, %v200
    %v219 = vcombine.high %v207, %v207
    %v220 = vcombine.high %v214, %v214
    %v222 = vunpack.c.l.s4 1966171168
    %v223 = vunpack.c.0.s8 %v222
    %v224 = vlaneseq
    %v225 = vshrl.u32 %v224, 7
    %v226 = vsub.s32 %v223, %v225
    %v227 = vrot.slane %v215, %v226
    %v229 = vunpack.c.l.s4 1966171168
    %v230 = vunpack.c.0.s8 %v229
    %v231 = vlaneseq
    %v232 = vshrl.u32 %v231, 7
    %v233 = vsub.s32 %v230, %v232
    %v234 = vrot.slane %v217, %v233
    %v236 = vunpack.c.l.s4 1966171168
    %v237 = vunpack.c.0.s8 %v236
    %v238 = vlaneseq
    %v239 = vshrl.u32 %v238, 7
    %v240 = vsub.s32 %v237, %v239
    %v241 = vrot.slane %v216, %v240
    %v243 = vunpack.c.l.s4 1966171168
    %v244 = vunpack.c.0.s8 %v243
    %v245 = vlaneseq
    %v246 = vshrl.u32 %v245, 7
    %v247 = vsub.s32 %v244, %v246
    %v248 = vrot.slane %v218, %v247
    %v250 = vunpack.c.l.s4 1966171168
    %v251 = vunpack.c.0.s8 %v250
    %v252 = vlaneseq
    %v253 = vshrl.u32 %v252, 7
    %v254 = vsub.s32 %v251, %v253
    %v255 = vrot.slane %v207, %v254
    %v257 = vunpack.c.l.s4 1966171168
    %v258 = vunpack.c.0.s8 %v257
    %v259 = vlaneseq
    %v260 = vshrl.u32 %v259, 7
    %v261 = vsub.s32 %v258, %v260
    %v262 = vrot.slane %v214, %v261
    %v264 = vunpack.c.l.s4 1966171168
    %v265 = vunpack.c.0.s8 %v264
    %v266 = vlaneseq
    %v267 = vshrl.u32 %v266, 7
    %v268 = vsub.s32 %v265, %v267
    %v269 = vrot.slane %v219, %v268
    %v271 = vunpack.c.l.s4 1966171168
    %v272 = vunpack.c.0.s8 %v271
    %v273 = vlaneseq
    %v274 = vshrl.u32 %v273, 7
    %v275 = vsub.s32 %v272, %v274
    %v276 = vrot.slane %v220, %v275
    %v277 = vcombine.low %v227, %v255
    %v278 = vcombine.high %v227, %v255
    %v279 = vcombine.low %v234, %v262
    %v280 = vcombine.high %v234, %v262
    %v281 = vcombine.low %v241, %v269
    %v282 = vcombine.high %v241, %v269
    %v283 = vcombine.low %v248, %v276
    %v284 = vcombine.high %v248, %v276
    %v285 = vlaneseq
    %v286 = vshrl.u32 %v285, 7
    %v287 = vsub.s32 0, %v286
    %v288 = vrot.slane %v277, %v287
    %v289 = vlaneseq
    %v290 = vshrl.u32 %v289, 7
    %v291 = vsub.s32 1, %v290
    %v292 = vrot.slane %v277, %v291
    %v293 = vlaneseq
    %v294 = vshrl.u32 %v293, 7
    %v295 = vsub.s32 2, %v294
    %v296 = vrot.slane %v277, %v295
    %v297 = vlaneseq
    %v298 = vshrl.u32 %v297, 7
    %v299 = vsub.s32 3, %v298
    %v300 = vrot.slane %v277, %v299
    %v301 = vlaneseq
    %v302 = vshrl.u32 %v301, 7
    %v303 = vsub.s32 4, %v302
    %v304 = vrot.slane %v277, %v303
    %v305 = vlaneseq
    %v306 = vshrl.u32 %v305, 7
    %v307 = vsub.s32 0, %v306
    %v308 = vrot.slane %v281, %v307
    %v309 = vlaneseq
    %v310 = vshrl.u32 %v309, 7
    %v311 = vsub.s32 1, %v310
    %v312 = vrot.slane %v281, %v311
    %v313 = vlaneseq
    %v314 = vshrl.u32 %v313, 7
    %v315 = vsub.s32 2, %v314
    %v316 = vrot.slane %v281, %v315
    %v317 = vlaneseq
    %v318 = vshrl.u32 %v317, 7
    %v319 = vsub.s32 3, %v318
    %v320 = vrot.slane %v281, %v319
    %v321 = vlaneseq
    %v322 = vshrl.u32 %v321, 7
    %v323 = vsub.s32 4, %v322
    %v324 = vrot.slane %v281, %v323
    %v325 = vlaneseq
    %v326 = vshrl.u32 %v325, 7
    %v327 = vsub.s32 0, %v326
    %v328 = vrot.slane %v278, %v327
    %v329 = vlaneseq
    %v330 = vshrl.u32 %v329, 7
    %v331 = vsub.s32 1, %v330
    %v332 = vrot.slane %v278, %v331
    %v333 = vlaneseq
    %v334 = vshrl.u32 %v333, 7
    %v335 = vsub.s32 2, %v334
    %v336 = vrot.slane %v278, %v335
    %v337 = vlaneseq
    %v338 = vshrl.u32 %v337, 7
    %v339 = vsub.s32 3, %v338
    %v340 = vrot.slane %v278, %v339
    %v341 = vlaneseq
    %v342 = vshrl.u32 %v341, 7
    %v343 = vsub.s32 4, %v342
    %v344 = vrot.slane %v278, %v343
    %v345 = vlaneseq
    %v346 = vshrl.u32 %v345, 7
    %v347 = vsub.s32 0, %v346
    %v348 = vrot.slane %v282, %v347
    %v349 = vlaneseq
    %v350 = vshrl.u32 %v349, 7
    %v351 = vsub.s32 1, %v350
    %v352 = vrot.slane %v282, %v351
    %v353 = vlaneseq
    %v354 = vshrl.u32 %v353, 7
    %v355 = vsub.s32 2, %v354
    %v356 = vrot.slane %v282, %v355
    %v357 = vlaneseq
    %v358 = vshrl.u32 %v357, 7
    %v359 = vsub.s32 3, %v358
    %v360 = vrot.slane %v282, %v359
    %v361 = vlaneseq
    %v362 = vshrl.u32 %v361, 7
    %v363 = vsub.s32 4, %v362
    %v364 = vrot.slane %v282, %v363
    %v365 = vlaneseq
    %v366 = vshrl.u32 %v365, 7
    %v367 = vsub.s32 0, %v366
    %v368 = vrot.slane %v279, %v367
    %v369 = vlaneseq
    %v370 = vshrl.u32 %v369, 7
    %v371 = vsub.s32 1, %v370
    %v372 = vrot.slane %v279, %v371
    %v373 = vlaneseq
    %v374 = vshrl.u32 %v373, 7
    %v375 = vsub.s32 2, %v374
    %v376 = vrot.slane %v279, %v375
    %v377 = vlaneseq
    %v378 = vshrl.u32 %v377, 7
    %v379 = vsub.s32 3, %v378
    %v380 = vrot.slane %v279, %v379
    %v381 = vlaneseq
    %v382 = vshrl.u32 %v381, 7
    %v383 = vsub.s32 4, %v382
    %v384 = vrot.slane %v279, %v383
    %v385 = vlaneseq
    %v386 = vshrl.u32 %v385, 7
    %v387 = vsub.s32 0, %v386
    %v388 = vrot.slane %v283, %v387
    %v389 = vlaneseq
    %v390 = vshrl.u32 %v389, 7
    %v391 = vsub.s32 1, %v390
    %v392 = vrot.slane %v283, %v391
    %v393 = vlaneseq
    %v394 = vshrl.u32 %v393, 7
    %v395 = vsub.s32 2, %v394
    %v396 = vrot.slane %v283, %v395
    %v397 = vlaneseq
    %v398 = vshrl.u32 %v397, 7
    %v399 = vsub.s32 3, %v398
    %v400 = vrot.slane %v283, %v399
    %v401 = vlaneseq
    %v402 = vshrl.u32 %v401, 7
    %v403 = vsub.s32 4, %v402
    %v404 = vrot.slane %v283, %v403
    %v405 = vlaneseq
    %v406 = vshrl.u32 %v405, 7
    %v407 = vsub.s32 0, %v406
    %v408 = vrot.slane %v280, %v407
    %v409 = vlaneseq
    %v410 = vshrl.u32 %v409, 7
    %v411 = vsub.s32 1, %v410
    %v412 = vrot.slane %v280, %v411
    %v413 = vlaneseq
    %v414 = vshrl.u32 %v413, 7
    %v415 = vsub.s32 2, %v414
    %v416 = vrot.slane %v280, %v415
    %v417 = vlaneseq
    %v418 = vshrl.u32 %v417, 7
    %v419 = vsub.s32 3, %v418
    %v420 = vrot.slane %v280, %v419
    %v421 = vlaneseq
    %v422 = vshrl.u32 %v421, 7
    %v423 = vsub.s32 4, %v422
    %v424 = vrot.slane %v280, %v423
    %v425 = vlaneseq
    %v426 = vshrl.u32 %v425, 7
    %v427 = vsub.s32 0, %v426
    %v428 = vrot.slane %v284, %v427
    %v429 = vlaneseq
    %v430 = vshrl.u32 %v429, 7
    %v431 = vsub.s32 1, %v430
    %v432 = vrot.slane %v284, %v431
    %v433 = vlaneseq
    %v434 = vshrl.u32 %v433, 7
    %v435 = vsub.s32 2, %v434
    %v436 = vrot.slane %v284, %v435
    %v437 = vlaneseq
    %v438 = vshrl.u32 %v437, 7
    %v439 = vsub.s32 3, %v438
    %v440 = vrot.slane %v284, %v439
    %v441 = vlaneseq
    %v442 = vshrl.u32 %v441, 7
    %v443 = vsub.s32 4, %v442
    %v444 = vrot.slane %v284, %v443
    %v501 = vcombine.high %v132, %v132
    %v502 = vcombine.high %v133, %v133
    %v503 = vcombine.high %v135, %v135
    %v504 = vcombine.high %v136, %v136
    %v505 = vcombine.high %v138, %v138
    %v506 = vcombine.high %v139, %v139
    %v507 = vcombine.high %v141, %v141
    %v508 = vcombine.high %v142, %v142
    %v509 = vcombine.high %v144, %v144
    %v510 = vcombine.high %v145, %v145
    %v511 = vcombine.high %v147, %v147
    %v512 = vcombine.high %v148, %v148
    %v513 = vcombine.high %v150, %v150
    %v514 = vcombine.high %v151, %v151
    %v515 = vcombine.high %v153, %v153
    %v516 = vcombine.high %v154, %v154
    %v533 = vmul.f32 %v288, %v132
    %v534 = vmul.f32 %v292, %v501
    %v535 = vmul.f32 %v296, %v133
    %v536 = vmul.f32 %v300, %v502
    %v537 = vmul.f32 %v304, %v134
    %v538 = vmul.f32 %v308, %v135
    %v539 = vmul.f32 %v312, %v503
    %v540 = vmul.f32 %v316, %v136
    %v541 = vmul.f32 %v320, %v504
    %v542 = vmul.f32 %v324, %v137
    %v543 = vmul.f32 %v328, %v138
    %v544 = vmul.f32 %v332, %v505
    %v545 = vmul.f32 %v336, %v139
    %v546 = vmul.f32 %v340, %v506
    %v547 = vmul.f32 %v344, %v140
    %v548 = vmul.f32 %v348, %v141
    %v549 = vmul.f32 %v352, %v507
    %v550 = vmul.f32 %v356, %v142
    %v551 = vmul.f32 %v360, %v508
    %v552 = vmul.f32 %v364, %v143
    %v553 = vmul.f32 %v368, %v144
    %v554 = vmul.f32 %v372, %v509
    %v555 = vmul.f32 %v376, %v145
    %v556 = vmul.f32 %v380, %v510
    %v557 = vmul.f32 %v384, %v146
    %v558 = vmul.f32 %v388, %v147
    %v559 = vmul.f32 %v392, %v511
    %v560 = vmul.f32 %v396, %v148
    %v561 = vmul.f32 %v400, %v512
    %v562 = vmul.f32 %v404, %v149
    %v563 = vmul.f32 %v408, %v150
    %v564 = vmul.f32 %v412, %v513
    %v565 = vmul.f32 %v416, %v151
    %v566 = vmul.f32 %v420, %v514
    %v567 = vmul.f32 %v424, %v152
    %v568 = vmul.f32 %v428, %v153
    %v569 = vmul.f32 %v432, %v515
    %v570 = vmul.f32 %v436, %v154
    %v571 = vmul.f32 %v440, %v516
    %v572 = vmul.f32 %v444, %v155
    %vm573 = vcmask 1042432
    %v574 = vsel %vm573, %v533, 0.0
    %v575 = vsel %vm573, %v534, 0.0
    %v576 = vadd.f32 %v574, %v575
    %v577 = vsel %vm573, %v535, 0.0
    %v578 = vadd.f32 %v576, %v577
    %v579 = vsel %vm573, %v536, 0.0
    %v580 = vadd.f32 %v578, %v579
    %v581 = vsel %vm573, %v537, 0.0
    %v582 = vadd.f32 %v580, %v581
    %583 = vadd.xlane.f32.xlu0 %v582
    %v584 = vpop.xlane.xlu0 %583
    %v585 = vsel %vm573, %v538, 0.0
    %v586 = vsel %vm573, %v539, 0.0
    %v587 = vadd.f32 %v585, %v586
    %v588 = vsel %vm573, %v540, 0.0
    %v589 = vadd.f32 %v587, %v588
    %v590 = vsel %vm573, %v541, 0.0
    %v591 = vadd.f32 %v589, %v590
    %v592 = vsel %vm573, %v542, 0.0
    %v593 = vadd.f32 %v591, %v592
    %594 = vadd.xlane.f32.xlu0 %v593
    %v595 = vpop.xlane.xlu0 %594
    %v596 = vsel %vm573, %v543, 0.0
    %v597 = vsel %vm573, %v544, 0.0
    %v598 = vadd.f32 %v596, %v597
    %v599 = vsel %vm573, %v545, 0.0
    %v600 = vadd.f32 %v598, %v599
    %v601 = vsel %vm573, %v546, 0.0
    %v602 = vadd.f32 %v600, %v601
    %v603 = vsel %vm573, %v547, 0.0
    %v604 = vadd.f32 %v602, %v603
    %605 = vadd.xlane.f32.xlu0 %v604
    %v606 = vpop.xlane.xlu0 %605
    %v607 = vsel %vm573, %v548, 0.0
    %v608 = vsel %vm573, %v549, 0.0
    %v609 = vadd.f32 %v607, %v608
    %v610 = vsel %vm573, %v550, 0.0
    %v611 = vadd.f32 %v609, %v610
    %v612 = vsel %vm573, %v551, 0.0
    %v613 = vadd.f32 %v611, %v612
    %v614 = vsel %vm573, %v552, 0.0
    %v615 = vadd.f32 %v613, %v614
    %616 = vadd.xlane.f32.xlu0 %v615
    %v617 = vpop.xlane.xlu0 %616
    %v618 = vsel %vm573, %v553, 0.0
    %v619 = vsel %vm573, %v554, 0.0
    %v620 = vadd.f32 %v618, %v619
    %v621 = vsel %vm573, %v555, 0.0
    %v622 = vadd.f32 %v620, %v621
    %v623 = vsel %vm573, %v556, 0.0
    %v624 = vadd.f32 %v622, %v623
    %v625 = vsel %vm573, %v557, 0.0
    %v626 = vadd.f32 %v624, %v625
    %627 = vadd.xlane.f32.xlu0 %v626
    %v628 = vpop.xlane.xlu0 %627
    %v629 = vsel %vm573, %v558, 0.0
    %v630 = vsel %vm573, %v559, 0.0
    %v631 = vadd.f32 %v629, %v630
    %v632 = vsel %vm573, %v560, 0.0
    %v633 = vadd.f32 %v631, %v632
    %v634 = vsel %vm573, %v561, 0.0
    %v635 = vadd.f32 %v633, %v634
    %v636 = vsel %vm573, %v562, 0.0
    %v637 = vadd.f32 %v635, %v636
    %638 = vadd.xlane.f32.xlu0 %v637
    %v639 = vpop.xlane.xlu0 %638
    %v640 = vsel %vm573, %v563, 0.0
    %v641 = vsel %vm573, %v564, 0.0
    %v642 = vadd.f32 %v640, %v641
    %v643 = vsel %vm573, %v565, 0.0
    %v644 = vadd.f32 %v642, %v643
    %v645 = vsel %vm573, %v566, 0.0
    %v646 = vadd.f32 %v644, %v645
    %v647 = vsel %vm573, %v567, 0.0
    %v648 = vadd.f32 %v646, %v647
    %649 = vadd.xlane.f32.xlu0 %v648
    %v650 = vpop.xlane.xlu0 %649
    %v651 = vsel %vm573, %v568, 0.0
    %v652 = vsel %vm573, %v569, 0.0
    %v653 = vadd.f32 %v651, %v652
    %v654 = vsel %vm573, %v570, 0.0
    %v655 = vadd.f32 %v653, %v654
    %v656 = vsel %vm573, %v571, 0.0
    %v657 = vadd.f32 %v655, %v656
    %v658 = vsel %vm573, %v572, 0.0
    %v659 = vadd.f32 %v657, %v658
    %660 = vadd.xlane.f32.xlu0 %v659
    %v661 = vpop.xlane.xlu0 %660
    %v663 = vlaneseq
    %v664 = vshrl.u32 %v663, 7
    %v665 = vsub.s32 0, %v664
    %v666 = vrot.slane %v156, %v665
    %668 = vbcast.lane.b32.xlu0 %v666, 256
    %v669 = vpop.permute.xlu0 %668
    %v670 = vlaneseq
    %v671 = vshrl.u32 %v670, 7
    %v672 = vsub.s32 1, %v671
    %v673 = vrot.slane %v156, %v672
    %675 = vbcast.lane.b32.xlu0 %v673, 256
    %v676 = vpop.permute.xlu0 %675
    %v677 = vlaneseq
    %v678 = vshrl.u32 %v677, 7
    %v679 = vsub.s32 2, %v678
    %v680 = vrot.slane %v156, %v679
    %682 = vbcast.lane.b32.xlu0 %v680, 256
    %v683 = vpop.permute.xlu0 %682
    %v684 = vlaneseq
    %v685 = vshrl.u32 %v684, 7
    %v686 = vsub.s32 3, %v685
    %v687 = vrot.slane %v156, %v686
    %689 = vbcast.lane.b32.xlu0 %v687, 256
    %v690 = vpop.permute.xlu0 %689
    %v691 = vlaneseq
    %v692 = vshrl.u32 %v691, 7
    %v693 = vsub.s32 4, %v692
    %v694 = vrot.slane %v156, %v693
    %696 = vbcast.lane.b32.xlu0 %v694, 256
    %v697 = vpop.permute.xlu0 %696
    %v698 = vlaneseq
    %v699 = vshrl.u32 %v698, 7
    %v700 = vsub.s32 5, %v699
    %v701 = vrot.slane %v156, %v700
    %703 = vbcast.lane.b32.xlu0 %v701, 256
    %v704 = vpop.permute.xlu0 %703
    %v705 = vlaneseq
    %v706 = vshrl.u32 %v705, 7
    %v707 = vsub.s32 6, %v706
    %v708 = vrot.slane %v156, %v707
    %710 = vbcast.lane.b32.xlu0 %v708, 256
    %v711 = vpop.permute.xlu0 %710
    %v712 = vlaneseq
    %v713 = vshrl.u32 %v712, 7
    %v714 = vsub.s32 7, %v713
    %v715 = vrot.slane %v156, %v714
    %717 = vbcast.lane.b32.xlu0 %v715, 256
    %v718 = vpop.permute.xlu0 %717
    %v727 = vadd.f32 %v584, %v669
    %v728 = vadd.f32 %v595, %v676
    %v729 = vadd.f32 %v606, %v683
    %v730 = vadd.f32 %v617, %v690
    %v731 = vadd.f32 %v628, %v697
    %v732 = vadd.f32 %v639, %v704
    %v733 = vadd.f32 %v650, %v711
    %v734 = vadd.f32 %v661, %v718
    %v736 = vlaneseq
    %v737 = vshrl.u32 %v736, 7
    %v738 = vsub.s32 0, %v737
    %v739 = vrot.slane %v157, %v738
    %741 = vbcast.lane.b32.xlu0 %v739, 256
    %v742 = vpop.permute.xlu0 %741
    %v744 = vmul.f32 %v727, %v742
    %v745 = vmul.f32 %v728, %v742
    %v746 = vmul.f32 %v729, %v742
    %v747 = vmul.f32 %v730, %v742
    %v748 = vmul.f32 %v731, %v742
    %v749 = vmul.f32 %v732, %v742
    %v750 = vmul.f32 %v733, %v742
    %v751 = vmul.f32 %v734, %v742
    %v753 = vlaneseq
    %v754 = vshrl.u32 %v753, 7
    %v755 = vsub.s32 0, %v754
    %v756 = vrot.slane %v47, %v755
    %758 = vbcast.lane.b32.xlu0 %v756, 256
    %v759 = vpop.permute.xlu0 %758
    %v760 = vlaneseq
    %v761 = vshrl.u32 %v760, 7
    %v762 = vsub.s32 1, %v761
    %v763 = vrot.slane %v47, %v762
    %765 = vbcast.lane.b32.xlu0 %v763, 256
    %v766 = vpop.permute.xlu0 %765
    %v767 = vlaneseq
    %v768 = vshrl.u32 %v767, 7
    %v769 = vsub.s32 2, %v768
    %v770 = vrot.slane %v47, %v769
    %772 = vbcast.lane.b32.xlu0 %v770, 256
    %v773 = vpop.permute.xlu0 %772
    %v774 = vlaneseq
    %v775 = vshrl.u32 %v774, 7
    %v776 = vsub.s32 3, %v775
    %v777 = vrot.slane %v47, %v776
    %779 = vbcast.lane.b32.xlu0 %v777, 256
    %v780 = vpop.permute.xlu0 %779
    %v781 = vlaneseq
    %v782 = vshrl.u32 %v781, 7
    %v783 = vsub.s32 4, %v782
    %v784 = vrot.slane %v47, %v783
    %786 = vbcast.lane.b32.xlu0 %v784, 256
    %v787 = vpop.permute.xlu0 %786
    %v788 = vlaneseq
    %v789 = vshrl.u32 %v788, 7
    %v790 = vsub.s32 5, %v789
    %v791 = vrot.slane %v47, %v790
    %793 = vbcast.lane.b32.xlu0 %v791, 256
    %v794 = vpop.permute.xlu0 %793
    %v795 = vlaneseq
    %v796 = vshrl.u32 %v795, 7
    %v797 = vsub.s32 6, %v796
    %v798 = vrot.slane %v47, %v797
    %800 = vbcast.lane.b32.xlu0 %v798, 256
    %v801 = vpop.permute.xlu0 %800
    %v802 = vlaneseq
    %v803 = vshrl.u32 %v802, 7
    %v804 = vsub.s32 7, %v803
    %v805 = vrot.slane %v47, %v804
    %807 = vbcast.lane.b32.xlu0 %v805, 256
    %v808 = vpop.permute.xlu0 %807
    %v817 = vadd.f32 %v744, %v759
    %v818 = vadd.f32 %v745, %v766
    %v819 = vadd.f32 %v746, %v773
    %v820 = vadd.f32 %v747, %v780
    %v821 = vadd.f32 %v748, %v787
    %v822 = vadd.f32 %v749, %v794
    %v823 = vadd.f32 %v750, %v801
    %v824 = vadd.f32 %v751, %v808
    %833 = vset.pattern.permute.xlu0 0
    %834 = vperm.xlu0 %833, %v817
    %v835 = vpop.permute.xlu0 %834
    %836 = vset.pattern.permute.xlu0 0
    %837 = vperm.xlu0 %836, %v818
    %v838 = vpop.permute.xlu0 %837
    %839 = vset.pattern.permute.xlu0 0
    %840 = vperm.xlu0 %839, %v819
    %v841 = vpop.permute.xlu0 %840
    %842 = vset.pattern.permute.xlu0 0
    %843 = vperm.xlu0 %842, %v820
    %v844 = vpop.permute.xlu0 %843
    %845 = vset.pattern.permute.xlu0 0
    %846 = vperm.xlu0 %845, %v821
    %v847 = vpop.permute.xlu0 %846
    %848 = vset.pattern.permute.xlu0 0
    %849 = vperm.xlu0 %848, %v822
    %v850 = vpop.permute.xlu0 %849
    %851 = vset.pattern.permute.xlu0 0
    %852 = vperm.xlu0 %851, %v823
    %v853 = vpop.permute.xlu0 %852
    %854 = vset.pattern.permute.xlu0 0
    %855 = vperm.xlu0 %854, %v824
    %v856 = vpop.permute.xlu0 %855
    %v857 = vlaneseq
    %v858 = vand.u32 %v857, 127
    %v859 = vlaneseq
    %v860 = vshrl.u32 %v859, 7
    %v861 = vsub.s32 %v858, %v860
    %v862 = vrot.slane %v835, %v861
    %v863 = vlaneseq
    %v864 = vshrl.u32 %v863, 7
    %v865 = vsub.s32 %v858, %v864
    %v866 = vrot.slane %v838, %v865
    %v867 = vlaneseq
    %v868 = vshrl.u32 %v867, 7
    %v869 = vsub.s32 %v858, %v868
    %v870 = vrot.slane %v841, %v869
    %v871 = vlaneseq
    %v872 = vshrl.u32 %v871, 7
    %v873 = vsub.s32 %v858, %v872
    %v874 = vrot.slane %v844, %v873
    %v875 = vlaneseq
    %v876 = vshrl.u32 %v875, 7
    %v877 = vsub.s32 %v858, %v876
    %v878 = vrot.slane %v847, %v877
    %v879 = vlaneseq
    %v880 = vshrl.u32 %v879, 7
    %v881 = vsub.s32 %v858, %v880
    %v882 = vrot.slane %v850, %v881
    %v883 = vlaneseq
    %v884 = vshrl.u32 %v883, 7
    %v885 = vsub.s32 %v858, %v884
    %v886 = vrot.slane %v853, %v885
    %v887 = vlaneseq
    %v888 = vshrl.u32 %v887, 7
    %v889 = vsub.s32 %v858, %v888
    %v890 = vrot.slane %v856, %v889
    %vm891 = vcmask 1041409
    %v892 = vsel %vm891, %v866, %v862
    %vm893 = vcmask 1042434
    %v894 = vsel %vm893, %v870, %v892
    %vm895 = vcmask 1043459
    %v896 = vsel %vm895, %v874, %v894
    %vm897 = vcmask 1044484
    %v898 = vsel %vm897, %v878, %v896
    %vm899 = vcmask 1045509
    %v900 = vsel %vm899, %v882, %v898
    %vm901 = vcmask 1046534
    %v902 = vsel %vm901, %v886, %v900
    %vm903 = vcmask 1047559
    %v904 = vsel %vm903, %v890, %v902
    %vm906 = vcmask 23552
    %907 = vst.msk [vmem:[%s9] sm:$0xff] %vm906, %v904
    %s908 = scalar_lea.vmem %s0, 40
    %v909 = vld [vmem:[%s908] sm:$0xff]
    %v910 = vld [vmem:[%s908 + $0x8] sm:$0xff]
    %v911 = vld [vmem:[%s908 + $0x10] sm:$0xff]
    %v912 = vld [vmem:[%s908 + $0x18] sm:$0xff]
    %v913 = vld [vmem:[%s908 + $0x20] sm:$0xff]
    %v914 = vpack.c.bf16 %v909, %v158
    %v915 = vpack.c.bf16 %v910, %v159
    %v916 = vpack.c.bf16 %v911, %v160
    %v917 = vpack.c.bf16 %v912, %v161
    %v918 = vpack.c.bf16 %v913, %v162
    %v920 = vlaneseq
    %v921 = vshrl.u32 %v920, 7
    %v922 = vsub.s32 0, %v921
    %v923 = vrot.slane %v128, %v922
    %v924 = vlaneseq
    %v925 = vshrl.u32 %v924, 7
    %v926 = vsub.s32 1, %v925
    %v927 = vrot.slane %v128, %v926
    %v1010 = vunpack.c.l.b16 %v48
    %v1011 = vunpack.c.h.b16 %v48
    %v1012 = vunpack.c.l.b16 %v49
    %v1013 = vunpack.c.h.b16 %v49
    %v1014 = vunpack.c.l.b16 %v50
    %v1015 = vunpack.c.h.b16 %v50
    %v1016 = vunpack.c.l.b16 %v51
    %v1017 = vunpack.c.h.b16 %v51
    %v1018 = vunpack.c.l.b16 %v52
    %v1019 = vunpack.c.h.b16 %v52
    %v1020 = vunpack.c.l.b16 %v53
    %v1021 = vunpack.c.h.b16 %v53
    %v1022 = vunpack.c.l.b16 %v54
    %v1023 = vunpack.c.h.b16 %v54
    %v1024 = vunpack.c.l.b16 %v55
    %v1025 = vunpack.c.h.b16 %v55
    %v1026 = vunpack.c.l.b16 %v56
    %v1027 = vunpack.c.h.b16 %v56
    %v1028 = vunpack.c.l.b16 %v57
    %v1029 = vunpack.c.h.b16 %v57
    %v1030 = vunpack.c.l.b16 %v58
    %v1031 = vunpack.c.h.b16 %v58
    %v1032 = vunpack.c.l.b16 %v59
    %v1033 = vunpack.c.h.b16 %v59
    %v1034 = vunpack.c.l.b16 %v60
    %v1035 = vunpack.c.h.b16 %v60
    %v1036 = vunpack.c.l.b16 %v61
    %v1037 = vunpack.c.h.b16 %v61
    %v1038 = vunpack.c.l.b16 %v62
    %v1039 = vunpack.c.h.b16 %v62
    %v1040 = vunpack.c.l.b16 %v63
    %v1041 = vunpack.c.h.b16 %v63
    %v1042 = vunpack.c.l.b16 %v64
    %v1043 = vunpack.c.h.b16 %v64
    %v1044 = vunpack.c.l.b16 %v65
    %v1045 = vunpack.c.h.b16 %v65
    %v1046 = vunpack.c.l.b16 %v66
    %v1047 = vunpack.c.h.b16 %v66
    %v1048 = vunpack.c.l.b16 %v67
    %v1049 = vunpack.c.h.b16 %v67
    %v1050 = vunpack.c.l.b16 %v68
    %v1051 = vunpack.c.h.b16 %v68
    %v1052 = vunpack.c.l.b16 %v69
    %v1053 = vunpack.c.h.b16 %v69
    %v1054 = vunpack.c.l.b16 %v70
    %v1055 = vunpack.c.h.b16 %v70
    %v1056 = vunpack.c.l.b16 %v71
    %v1057 = vunpack.c.h.b16 %v71
    %v1058 = vunpack.c.l.b16 %v72
    %v1059 = vunpack.c.h.b16 %v72
    %v1060 = vunpack.c.l.b16 %v73
    %v1061 = vunpack.c.h.b16 %v73
    %v1062 = vunpack.c.l.b16 %v74
    %v1063 = vunpack.c.h.b16 %v74
    %v1064 = vunpack.c.l.b16 %v75
    %v1065 = vunpack.c.h.b16 %v75
    %v1066 = vunpack.c.l.b16 %v76
    %v1067 = vunpack.c.h.b16 %v76
    %v1068 = vunpack.c.l.b16 %v77
    %v1069 = vunpack.c.h.b16 %v77
    %v1070 = vunpack.c.l.b16 %v78
    %v1071 = vunpack.c.h.b16 %v78
    %v1072 = vunpack.c.l.b16 %v79
    %v1073 = vunpack.c.h.b16 %v79
    %v1074 = vunpack.c.l.b16 %v80
    %v1075 = vunpack.c.h.b16 %v80
    %v1076 = vunpack.c.l.b16 %v81
    %v1077 = vunpack.c.h.b16 %v81
    %v1078 = vunpack.c.l.b16 %v82
    %v1079 = vunpack.c.h.b16 %v82
    %v1080 = vunpack.c.l.b16 %v83
    %v1081 = vunpack.c.h.b16 %v83
    %v1082 = vunpack.c.l.b16 %v84
    %v1083 = vunpack.c.h.b16 %v84
    %v1084 = vunpack.c.l.b16 %v85
    %v1085 = vunpack.c.h.b16 %v85
    %v1086 = vunpack.c.l.b16 %v86
    %v1087 = vunpack.c.h.b16 %v86
    %v1088 = vunpack.c.l.b16 %v87
    %v1089 = vunpack.c.h.b16 %v87
    %v1090 = vunpack.c.l.b16 %v88
    %v1091 = vunpack.c.h.b16 %v88
    %v1092 = vunpack.c.l.b16 %v89
    %v1093 = vunpack.c.h.b16 %v89
    %v1094 = vunpack.c.l.b16 %v90
    %v1095 = vunpack.c.h.b16 %v90
    %v1096 = vunpack.c.l.b16 %v91
    %v1097 = vunpack.c.h.b16 %v91
    %v1098 = vunpack.c.l.b16 %v92
    %v1099 = vunpack.c.h.b16 %v92
    %v1100 = vunpack.c.l.b16 %v93
    %v1101 = vunpack.c.h.b16 %v93
    %v1102 = vunpack.c.l.b16 %v94
    %v1103 = vunpack.c.h.b16 %v94
    %v1104 = vunpack.c.l.b16 %v95
    %v1105 = vunpack.c.h.b16 %v95
    %v1106 = vunpack.c.l.b16 %v96
    %v1107 = vunpack.c.h.b16 %v96
    %v1108 = vunpack.c.l.b16 %v97
    %v1109 = vunpack.c.h.b16 %v97
    %v1110 = vunpack.c.l.b16 %v98
    %v1111 = vunpack.c.h.b16 %v98
    %v1112 = vunpack.c.l.b16 %v99
    %v1113 = vunpack.c.h.b16 %v99
    %v1114 = vunpack.c.l.b16 %v100
    %v1115 = vunpack.c.h.b16 %v100
    %v1116 = vunpack.c.l.b16 %v101
    %v1117 = vunpack.c.h.b16 %v101
    %v1118 = vunpack.c.l.b16 %v102
    %v1119 = vunpack.c.h.b16 %v102
    %v1120 = vunpack.c.l.b16 %v103
    %v1121 = vunpack.c.h.b16 %v103
    %v1122 = vunpack.c.l.b16 %v104
    %v1123 = vunpack.c.h.b16 %v104
    %v1124 = vunpack.c.l.b16 %v105
    %v1125 = vunpack.c.h.b16 %v105
    %v1126 = vunpack.c.l.b16 %v106
    %v1127 = vunpack.c.h.b16 %v106
    %v1128 = vunpack.c.l.b16 %v107
    %v1129 = vunpack.c.h.b16 %v107
    %v1130 = vunpack.c.l.b16 %v108
    %v1131 = vunpack.c.h.b16 %v108
    %v1132 = vunpack.c.l.b16 %v109
    %v1133 = vunpack.c.h.b16 %v109
    %v1134 = vunpack.c.l.b16 %v110
    %v1135 = vunpack.c.h.b16 %v110
    %v1136 = vunpack.c.l.b16 %v111
    %v1137 = vunpack.c.h.b16 %v111
    %v1138 = vunpack.c.l.b16 %v112
    %v1139 = vunpack.c.h.b16 %v112
    %v1140 = vunpack.c.l.b16 %v113
    %v1141 = vunpack.c.h.b16 %v113
    %v1142 = vunpack.c.l.b16 %v114
    %v1143 = vunpack.c.h.b16 %v114
    %v1144 = vunpack.c.l.b16 %v115
    %v1145 = vunpack.c.h.b16 %v115
    %v1146 = vunpack.c.l.b16 %v116
    %v1147 = vunpack.c.h.b16 %v116
    %v1148 = vunpack.c.l.b16 %v117
    %v1149 = vunpack.c.h.b16 %v117
    %v1150 = vunpack.c.l.b16 %v118
    %v1151 = vunpack.c.h.b16 %v118
    %v1152 = vunpack.c.l.b16 %v119
    %v1153 = vunpack.c.h.b16 %v119
    %v1154 = vunpack.c.l.b16 %v120
    %v1155 = vunpack.c.h.b16 %v120
    %v1156 = vunpack.c.l.b16 %v121
    %v1157 = vunpack.c.h.b16 %v121
    %v1158 = vunpack.c.l.b16 %v122
    %v1159 = vunpack.c.h.b16 %v122
    %v1160 = vunpack.c.l.b16 %v123
    %v1161 = vunpack.c.h.b16 %v123
    %v1162 = vunpack.c.l.b16 %v124
    %v1163 = vunpack.c.h.b16 %v124
    %v1164 = vunpack.c.l.b16 %v125
    %v1165 = vunpack.c.h.b16 %v125
    %v1166 = vunpack.c.l.b16 %v126
    %v1167 = vunpack.c.h.b16 %v126
    %v1168 = vunpack.c.l.b16 %v127
    %v1169 = vunpack.c.h.b16 %v127
    %v1170 = vpack.c.b16 %v1012, %v1010
    %v1171 = vpack.c.b16 %v1013, %v1011
    %v1172 = vpack.c.b16 %v1016, %v1014
    %v1173 = vpack.c.b16 %v1017, %v1015
    %v1174 = vpack.c.b16 %v1020, %v1018
    %v1175 = vpack.c.b16 %v1021, %v1019
    %v1176 = vpack.c.b16 %v1024, %v1022
    %v1177 = vpack.c.b16 %v1025, %v1023
    %v1178 = vpack.c.b16 %v1028, %v1026
    %v1179 = vpack.c.b16 %v1029, %v1027
    %v1180 = vpack.c.b16 %v1032, %v1030
    %v1181 = vpack.c.b16 %v1033, %v1031
    %v1182 = vpack.c.b16 %v1036, %v1034
    %v1183 = vpack.c.b16 %v1037, %v1035
    %v1184 = vpack.c.b16 %v1040, %v1038
    %v1185 = vpack.c.b16 %v1041, %v1039
    %v1186 = vpack.c.b16 %v1044, %v1042
    %v1187 = vpack.c.b16 %v1045, %v1043
    %v1188 = vpack.c.b16 %v1048, %v1046
    %v1189 = vpack.c.b16 %v1049, %v1047
    %v1190 = vpack.c.b16 %v1052, %v1050
    %v1191 = vpack.c.b16 %v1053, %v1051
    %v1192 = vpack.c.b16 %v1056, %v1054
    %v1193 = vpack.c.b16 %v1057, %v1055
    %v1194 = vpack.c.b16 %v1060, %v1058
    %v1195 = vpack.c.b16 %v1061, %v1059
    %v1196 = vpack.c.b16 %v1064, %v1062
    %v1197 = vpack.c.b16 %v1065, %v1063
    %v1198 = vpack.c.b16 %v1068, %v1066
    %v1199 = vpack.c.b16 %v1069, %v1067
    %v1200 = vpack.c.b16 %v1072, %v1070
    %v1201 = vpack.c.b16 %v1073, %v1071
    %v1202 = vpack.c.b16 %v1076, %v1074
    %v1203 = vpack.c.b16 %v1077, %v1075
    %v1204 = vpack.c.b16 %v1080, %v1078
    %v1205 = vpack.c.b16 %v1081, %v1079
    %v1206 = vpack.c.b16 %v1084, %v1082
    %v1207 = vpack.c.b16 %v1085, %v1083
    %v1208 = vpack.c.b16 %v1088, %v1086
    %v1209 = vpack.c.b16 %v1089, %v1087
    %v1210 = vpack.c.b16 %v1092, %v1090
    %v1211 = vpack.c.b16 %v1093, %v1091
    %v1212 = vpack.c.b16 %v1096, %v1094
    %v1213 = vpack.c.b16 %v1097, %v1095
    %v1214 = vpack.c.b16 %v1100, %v1098
    %v1215 = vpack.c.b16 %v1101, %v1099
    %v1216 = vpack.c.b16 %v1104, %v1102
    %v1217 = vpack.c.b16 %v1105, %v1103
    %v1218 = vpack.c.b16 %v1108, %v1106
    %v1219 = vpack.c.b16 %v1109, %v1107
    %v1220 = vpack.c.b16 %v1112, %v1110
    %v1221 = vpack.c.b16 %v1113, %v1111
    %v1222 = vpack.c.b16 %v1116, %v1114
    %v1223 = vpack.c.b16 %v1117, %v1115
    %v1224 = vpack.c.b16 %v1120, %v1118
    %v1225 = vpack.c.b16 %v1121, %v1119
    %v1226 = vpack.c.b16 %v1124, %v1122
    %v1227 = vpack.c.b16 %v1125, %v1123
    %v1228 = vpack.c.b16 %v1128, %v1126
    %v1229 = vpack.c.b16 %v1129, %v1127
    %v1230 = vpack.c.b16 %v1132, %v1130
    %v1231 = vpack.c.b16 %v1133, %v1131
    %v1232 = vpack.c.b16 %v1136, %v1134
    %v1233 = vpack.c.b16 %v1137, %v1135
    %v1234 = vpack.c.b16 %v1140, %v1138
    %v1235 = vpack.c.b16 %v1141, %v1139
    %v1236 = vpack.c.b16 %v1144, %v1142
    %v1237 = vpack.c.b16 %v1145, %v1143
    %v1238 = vpack.c.b16 %v1148, %v1146
    %v1239 = vpack.c.b16 %v1149, %v1147
    %v1240 = vpack.c.b16 %v1152, %v1150
    %v1241 = vpack.c.b16 %v1153, %v1151
    %v1242 = vpack.c.b16 %v1156, %v1154
    %v1243 = vpack.c.b16 %v1157, %v1155
    %v1244 = vpack.c.b16 %v1160, %v1158
    %v1245 = vpack.c.b16 %v1161, %v1159
    %v1246 = vpack.c.b16 %v1164, %v1162
    %v1247 = vpack.c.b16 %v1165, %v1163
    %v1248 = vpack.c.b16 %v1168, %v1166
    %v1249 = vpack.c.b16 %v1169, %v1167
    %1330 = vmatprep.subr.bf16.mxu0 %v1171
    %1331 = vmatpush1.bf16.msra.mxu0 %v1170
    %1332 = vmatprep.subr.bf16.mxu0 %v1173
    %1333 = vmatpush1.bf16.msra.mxu0 %v1172
    %1334 = vmatprep.subr.bf16.mxu0 %v1175
    %1335 = vmatpush1.bf16.msra.mxu0 %v1174
    %1336 = vmatprep.subr.bf16.mxu0 %v1177
    %1337 = vmatpush1.bf16.msra.mxu0 %v1176
    %1338 = vmatprep.subr.bf16.mxu0 %v1179
    %1339 = vmatpush1.bf16.msra.mxu0 %v1178
    %1340 = vmatprep.subr.bf16.mxu0 %v1181
    %1341 = vmatpush1.bf16.msra.mxu0 %v1180
    %1342 = vmatprep.subr.bf16.mxu0 %v1183
    %1343 = vmatpush1.bf16.msra.mxu0 %v1182
    %1344 = vmatprep.subr.bf16.mxu0 %v1185
    %1345 = vmatpush1.bf16.msra.mxu0 %v1184
    %1346 = vmatprep.subr.bf16.mxu0 %v1187
    %1347 = vmatpush1.bf16.msra.mxu0 %v1186
    %1348 = vmatprep.subr.bf16.mxu0 %v1189
    %1349 = vmatpush1.bf16.msra.mxu0 %v1188
    %1350 = vmatprep.subr.bf16.mxu0 %v1191
    %1351 = vmatpush1.bf16.msra.mxu0 %v1190
    %1352 = vmatprep.subr.bf16.mxu0 %v1193
    %1353 = vmatpush1.bf16.msra.mxu0 %v1192
    %1354 = vmatprep.subr.bf16.mxu0 %v1195
    %1355 = vmatpush1.bf16.msra.mxu0 %v1194
    %1356 = vmatprep.subr.bf16.mxu0 %v1197
    %1357 = vmatpush1.bf16.msra.mxu0 %v1196
    %1358 = vmatprep.subr.bf16.mxu0 %v1199
    %1359 = vmatpush1.bf16.msra.mxu0 %v1198
    %1360 = vmatprep.subr.bf16.mxu0 %v1201
    %1361 = vmatpush1.bf16.msra.mxu0 %v1200
    %1362 = vmatprep.mubr.bf16.mxu0 %v915
    %1363 = vmatmul.mubr.bf16.gmra.mrb[0].mxu0 %v914
    %v1364 = vpop.f32.mrb[0].mxu0
    %v1365 = vadd.f32 %v923, %v1364
    %v1366 = vpop.f32.mrb[0].mxu0
    %v1367 = vadd.f32 %v927, %v1366
    %v1368 = vpop.f32.mrb[0].mxu0
    %v1369 = vadd.f32 %v923, %v1368
    %v1370 = vpop.f32.mrb[0].mxu0
    %v1371 = vadd.f32 %v927, %v1370
    %1372 = vdwg.mxu0
    %1373 = vmatprep.subr.bf16.mxu0 %v1203
    %1374 = vmatpush1.bf16.msra.mxu0 %v1202
    %1375 = vmatprep.subr.bf16.mxu0 %v1205
    %1376 = vmatpush1.bf16.msra.mxu0 %v1204
    %1377 = vmatprep.subr.bf16.mxu0 %v1207
    %1378 = vmatpush1.bf16.msra.mxu0 %v1206
    %1379 = vmatprep.subr.bf16.mxu0 %v1209
    %1380 = vmatpush1.bf16.msra.mxu0 %v1208
    %1381 = vmatprep.subr.bf16.mxu0 %v1211
    %1382 = vmatpush1.bf16.msra.mxu0 %v1210
    %1383 = vmatprep.subr.bf16.mxu0 %v1213
    %1384 = vmatpush1.bf16.msra.mxu0 %v1212
    %1385 = vmatprep.subr.bf16.mxu0 %v1215
    %1386 = vmatpush1.bf16.msra.mxu0 %v1214
    %1387 = vmatprep.subr.bf16.mxu0 %v1217
    %1388 = vmatpush1.bf16.msra.mxu0 %v1216
    %1389 = vmatprep.subr.bf16.mxu0 %v1219
    %1390 = vmatpush1.bf16.msra.mxu0 %v1218
    %1391 = vmatprep.subr.bf16.mxu0 %v1221
    %1392 = vmatpush1.bf16.msra.mxu0 %v1220
    %1393 = vmatprep.subr.bf16.mxu0 %v1223
    %1394 = vmatpush1.bf16.msra.mxu0 %v1222
    %1395 = vmatprep.subr.bf16.mxu0 %v1225
    %1396 = vmatpush1.bf16.msra.mxu0 %v1224
    %1397 = vmatprep.subr.bf16.mxu0 %v1227
    %1398 = vmatpush1.bf16.msra.mxu0 %v1226
    %1399 = vmatprep.subr.bf16.mxu0 %v1229
    %1400 = vmatpush1.bf16.msra.mxu0 %v1228
    %1401 = vmatprep.subr.bf16.mxu0 %v1231
    %1402 = vmatpush1.bf16.msra.mxu0 %v1230
    %1403 = vmatprep.subr.bf16.mxu0 %v1233
    %1404 = vmatpush1.bf16.msra.mxu0 %v1232
    %1405 = vmatprep.mubr.bf16.mxu0 %v917
    %1406 = vmatmul.mubr.bf16.gmra.mrb[0].mxu0 %v916
    %v1407 = vpop.f32.mrb[0].mxu0
    %v1408 = vadd.f32 %v1365, %v1407
    %v1409 = vpop.f32.mrb[0].mxu0
    %v1410 = vadd.f32 %v1367, %v1409
    %v1411 = vpop.f32.mrb[0].mxu0
    %v1412 = vadd.f32 %v1369, %v1411
    %v1413 = vpop.f32.mrb[0].mxu0
    %v1414 = vadd.f32 %v1371, %v1413
    %1415 = vdwg.mxu0
    %1416 = vmatprep.subr.bf16.mxu0 %v1235
    %1417 = vmatpush1.bf16.msra.mxu0 %v1234
    %1418 = vmatprep.subr.bf16.mxu0 %v1237
    %1419 = vmatpush1.bf16.msra.mxu0 %v1236
    %1420 = vmatprep.subr.bf16.mxu0 %v1239
    %1421 = vmatpush1.bf16.msra.mxu0 %v1238
    %1422 = vmatprep.subr.bf16.mxu0 %v1241
    %1423 = vmatpush1.bf16.msra.mxu0 %v1240
    %1424 = vmatprep.subr.bf16.mxu0 %v1243
    %1425 = vmatpush1.bf16.msra.mxu0 %v1242
    %1426 = vmatprep.subr.bf16.mxu0 %v1245
    %1427 = vmatpush1.bf16.msra.mxu0 %v1244
    %1428 = vmatprep.subr.bf16.mxu0 %v1247
    %1429 = vmatpush1.bf16.msra.mxu0 %v1246
    %1430 = vmatprep.subr.bf16.mxu0 %v1249
    %1431 = vmatpush1.bf16.msra.mxu0 %v1248
    %1432 = vmatprep.subr.bf16.mxu0 0
    %1433 = vmatpush1.bf16.msra.mxu0 0
    %1434 = vmatprep.subr.bf16.mxu0 0
    %1435 = vmatpush1.bf16.msra.mxu0 0
    %1436 = vmatprep.subr.bf16.mxu0 0
    %1437 = vmatpush1.bf16.msra.mxu0 0
    %1438 = vmatprep.subr.bf16.mxu0 0
    %1439 = vmatpush1.bf16.msra.mxu0 0
    %1440 = vmatprep.subr.bf16.mxu0 0
    %1441 = vmatpush1.bf16.msra.mxu0 0
    %1442 = vmatprep.subr.bf16.mxu0 0
    %1443 = vmatpush1.bf16.msra.mxu0 0
    %1444 = vmatprep.subr.bf16.mxu0 0
    %1445 = vmatpush1.bf16.msra.mxu0 0
    %1446 = vmatprep.subr.bf16.mxu0 0
    %1447 = vmatpush1.bf16.msra.mxu0 0
    %1448 = vmatprep.mubr.bf16.mxu0 0
    %1449 = vmatmul.mubr.bf16.gmra.mrb[0].mxu0 %v918
    %v1450 = vpop.f32.mrb[0].mxu0
    %v1451 = vadd.f32 %v1408, %v1450
    %v1452 = vpop.f32.mrb[0].mxu0
    %v1453 = vadd.f32 %v1410, %v1452
    %v1454 = vpop.f32.mrb[0].mxu0
    %v1455 = vadd.f32 %v1412, %v1454
    %v1456 = vpop.f32.mrb[0].mxu0
    %v1457 = vadd.f32 %v1414, %v1456
    %1458 = vdwg.mxu0
    %v1459 = vtanh.pop %v1451
    %v1460 = vtanh.pop %v1453
    %v1461 = vtanh.pop %v1455
    %v1462 = vtanh.pop %v1457
    %v1463 = vmul.f32 %v1459, %v130
    %v1464 = vmul.f32 %v1460, %v131
    %v1465 = vmul.f32 %v1461, %v130
    %v1466 = vmul.f32 %v1462, %v131
    %v1467 = vadd.f32 %v1463, %v1464
    %1468 = vadd.xlane.f32.xlu0 %v1467
    %v1469 = vpop.xlane.xlu0 %1468
    %v1470 = vadd.f32 %v1465, %v1466
    %1471 = vadd.xlane.f32.xlu0 %v1470
    %v1472 = vpop.xlane.xlu0 %1471
    %v1473 = vadd.f32 %v1469, %v129
    %v1474 = vadd.f32 %v1472, %v129
    %v1475 = vsub.f32 %v1473, %v1474
    %v1476 = vxor.u32 %v1475, 2147483648
    %v1477 = vmul.f32 %v1476, 1.442695
    %v1478 = vpow.pop %v1477
    %v1479 = vadd.f32 %v1478, 1.0
    %v1480 = vrcp.pop %v1479
    %v1481 = vmul.f32 1.0, %v1480
    %v1482 = vsub.f32 1.0, %v1481
    %1484 = vset.pattern.permute.xlu0 0
    %1485 = vperm.xlu0 %1484, %v1481
    %v1486 = vpop.permute.xlu0 %1485
    %v1488 = vmul.f32 %v158, %v1486
    %v1489 = vmul.f32 %v159, %v1486
    %v1490 = vmul.f32 %v160, %v1486
    %v1491 = vmul.f32 %v161, %v1486
    %v1492 = vmul.f32 %v162, %v1486
    %1494 = vset.pattern.permute.xlu0 0
    %1495 = vperm.xlu0 %1494, %v1482
    %v1496 = vpop.permute.xlu0 %1495
    %v1498 = vmul.f32 %v909, %v1496
    %v1499 = vmul.f32 %v910, %v1496
    %v1500 = vmul.f32 %v911, %v1496
    %v1501 = vmul.f32 %v912, %v1496
    %v1502 = vmul.f32 %v913, %v1496
    %v1503 = vadd.f32 %v1488, %v1498
    %v1504 = vadd.f32 %v1489, %v1499
    %v1505 = vadd.f32 %v1490, %v1500
    %v1506 = vadd.f32 %v1491, %v1501
    %v1507 = vadd.f32 %v1492, %v1502
    %v1508 = vmul.f32 %v47, %v1486
    %v1509 = vlaneseq
    %v1510 = vshrl.u32 %v1509, 7
    %v1511 = vsub.s32 0, %v1510
    %v1512 = vrot.slane %v1496, %v1511
    %v1513 = vlaneseq
    %v1514 = vshrl.u32 %v1513, 7
    %v1515 = vsub.s32 1, %v1514
    %v1516 = vrot.slane %v1496, %v1515
    %v1517 = vlaneseq
    %v1518 = vshrl.u32 %v1517, 7
    %v1519 = vsub.s32 2, %v1518
    %v1520 = vrot.slane %v1496, %v1519
    %v1521 = vlaneseq
    %v1522 = vshrl.u32 %v1521, 7
    %v1523 = vsub.s32 3, %v1522
    %v1524 = vrot.slane %v1496, %v1523
    %v1525 = vlaneseq
    %v1526 = vshrl.u32 %v1525, 7
    %v1527 = vsub.s32 4, %v1526
    %v1528 = vrot.slane %v1496, %v1527
    %v1529 = vlaneseq
    %v1530 = vshrl.u32 %v1529, 7
    %v1531 = vsub.s32 5, %v1530
    %v1532 = vrot.slane %v1496, %v1531
    %v1533 = vlaneseq
    %v1534 = vshrl.u32 %v1533, 7
    %v1535 = vsub.s32 6, %v1534
    %v1536 = vrot.slane %v1496, %v1535
    %v1537 = vlaneseq
    %v1538 = vshrl.u32 %v1537, 7
    %v1539 = vsub.s32 7, %v1538
    %v1540 = vrot.slane %v1496, %v1539
    %v1549 = vmul.f32 %v817, %v1512
    %v1550 = vmul.f32 %v818, %v1516
    %v1551 = vmul.f32 %v819, %v1520
    %v1552 = vmul.f32 %v820, %v1524
    %v1553 = vmul.f32 %v821, %v1528
    %v1554 = vmul.f32 %v822, %v1532
    %v1555 = vmul.f32 %v823, %v1536
    %v1556 = vmul.f32 %v824, %v1540
    %1565 = vset.pattern.permute.xlu0 0
    %1566 = vperm.xlu0 %1565, %v1549
    %v1567 = vpop.permute.xlu0 %1566
    %1568 = vset.pattern.permute.xlu0 0
    %1569 = vperm.xlu0 %1568, %v1550
    %v1570 = vpop.permute.xlu0 %1569
    %1571 = vset.pattern.permute.xlu0 0
    %1572 = vperm.xlu0 %1571, %v1551
    %v1573 = vpop.permute.xlu0 %1572
    %1574 = vset.pattern.permute.xlu0 0
    %1575 = vperm.xlu0 %1574, %v1552
    %v1576 = vpop.permute.xlu0 %1575
    %1577 = vset.pattern.permute.xlu0 0
    %1578 = vperm.xlu0 %1577, %v1553
    %v1579 = vpop.permute.xlu0 %1578
    %1580 = vset.pattern.permute.xlu0 0
    %1581 = vperm.xlu0 %1580, %v1554
    %v1582 = vpop.permute.xlu0 %1581
    %1583 = vset.pattern.permute.xlu0 0
    %1584 = vperm.xlu0 %1583, %v1555
    %v1585 = vpop.permute.xlu0 %1584
    %1586 = vset.pattern.permute.xlu0 0
    %1587 = vperm.xlu0 %1586, %v1556
    %v1588 = vpop.permute.xlu0 %1587
    %v1589 = vlaneseq
    %v1590 = vshrl.u32 %v1589, 7
    %v1591 = vsub.s32 %v858, %v1590
    %v1592 = vrot.slane %v1567, %v1591
    %v1593 = vlaneseq
    %v1594 = vshrl.u32 %v1593, 7
    %v1595 = vsub.s32 %v858, %v1594
    %v1596 = vrot.slane %v1570, %v1595
    %v1597 = vlaneseq
    %v1598 = vshrl.u32 %v1597, 7
    %v1599 = vsub.s32 %v858, %v1598
    %v1600 = vrot.slane %v1573, %v1599
    %v1601 = vlaneseq
    %v1602 = vshrl.u32 %v1601, 7
    %v1603 = vsub.s32 %v858, %v1602
    %v1604 = vrot.slane %v1576, %v1603
    %v1605 = vlaneseq
    %v1606 = vshrl.u32 %v1605, 7
    %v1607 = vsub.s32 %v858, %v1606
    %v1608 = vrot.slane %v1579, %v1607
    %v1609 = vlaneseq
    %v1610 = vshrl.u32 %v1609, 7
    %v1611 = vsub.s32 %v858, %v1610
    %v1612 = vrot.slane %v1582, %v1611
    %v1613 = vlaneseq
    %v1614 = vshrl.u32 %v1613, 7
    %v1615 = vsub.s32 %v858, %v1614
    %v1616 = vrot.slane %v1585, %v1615
    %v1617 = vlaneseq
    %v1618 = vshrl.u32 %v1617, 7
    %v1619 = vsub.s32 %v858, %v1618
    %v1620 = vrot.slane %v1588, %v1619
    %v1621 = vsel %vm891, %v1596, %v1592
    %v1622 = vsel %vm893, %v1600, %v1621
    %v1623 = vsel %vm895, %v1604, %v1622
    %v1624 = vsel %vm897, %v1608, %v1623
    %v1625 = vsel %vm899, %v1612, %v1624
    %v1626 = vsel %vm901, %v1616, %v1625
    %v1627 = vsel %vm903, %v1620, %v1626
    %v1629 = vadd.f32 %v1508, %v1627
    %v1635 = vcombine.low %v1503, %v1504
    %v1636 = vcombine.high %v1503, %v1504
    %v1637 = vcombine.low %v1505, %v1506
    %v1638 = vcombine.high %v1505, %v1506
    %v1639 = vcombine.high %v1507, %v1507
    %v1641 = vunpack.c.l.s4 1966171168
    %v1642 = vunpack.c.0.s8 %v1641
    %v1643 = vlaneseq
    %v1644 = vshrl.u32 %v1643, 7
    %v1645 = vsub.s32 %v1642, %v1644
    %v1646 = vrot.slane %v1635, %v1645
    %v1648 = vunpack.c.l.s4 1966171168
    %v1649 = vunpack.c.0.s8 %v1648
    %v1650 = vlaneseq
    %v1651 = vshrl.u32 %v1650, 7
    %v1652 = vsub.s32 %v1649, %v1651
    %v1653 = vrot.slane %v1636, %v1652
    %v1655 = vunpack.c.l.s4 1966171168
    %v1656 = vunpack.c.0.s8 %v1655
    %v1657 = vlaneseq
    %v1658 = vshrl.u32 %v1657, 7
    %v1659 = vsub.s32 %v1656, %v1658
    %v1660 = vrot.slane %v1637, %v1659
    %v1662 = vunpack.c.l.s4 1966171168
    %v1663 = vunpack.c.0.s8 %v1662
    %v1664 = vlaneseq
    %v1665 = vshrl.u32 %v1664, 7
    %v1666 = vsub.s32 %v1663, %v1665
    %v1667 = vrot.slane %v1638, %v1666
    %v1669 = vunpack.c.l.s4 1966171168
    %v1670 = vunpack.c.0.s8 %v1669
    %v1671 = vlaneseq
    %v1672 = vshrl.u32 %v1671, 7
    %v1673 = vsub.s32 %v1670, %v1672
    %v1674 = vrot.slane %v1507, %v1673
    %v1676 = vunpack.c.l.s4 1966171168
    %v1677 = vunpack.c.0.s8 %v1676
    %v1678 = vlaneseq
    %v1679 = vshrl.u32 %v1678, 7
    %v1680 = vsub.s32 %v1677, %v1679
    %v1681 = vrot.slane %v1639, %v1680
    %v1682 = vcombine.low %v1646, %v1660
    %v1683 = vcombine.high %v1646, %v1660
    %v1684 = vcombine.low %v1653, %v1667
    %v1685 = vcombine.high %v1653, %v1667
    %v1686 = vcombine.high %v1674, %v1674
    %v1687 = vcombine.high %v1681, %v1681
    %v1689 = vunpack.c.l.s4 1966171168
    %v1690 = vunpack.c.0.s8 %v1689
    %v1691 = vlaneseq
    %v1692 = vshrl.u32 %v1691, 7
    %v1693 = vsub.s32 %v1690, %v1692
    %v1694 = vrot.slane %v1682, %v1693
    %v1696 = vunpack.c.l.s4 1966171168
    %v1697 = vunpack.c.0.s8 %v1696
    %v1698 = vlaneseq
    %v1699 = vshrl.u32 %v1698, 7
    %v1700 = vsub.s32 %v1697, %v1699
    %v1701 = vrot.slane %v1684, %v1700
    %v1703 = vunpack.c.l.s4 1966171168
    %v1704 = vunpack.c.0.s8 %v1703
    %v1705 = vlaneseq
    %v1706 = vshrl.u32 %v1705, 7
    %v1707 = vsub.s32 %v1704, %v1706
    %v1708 = vrot.slane %v1683, %v1707
    %v1710 = vunpack.c.l.s4 1966171168
    %v1711 = vunpack.c.0.s8 %v1710
    %v1712 = vlaneseq
    %v1713 = vshrl.u32 %v1712, 7
    %v1714 = vsub.s32 %v1711, %v1713
    %v1715 = vrot.slane %v1685, %v1714
    %v1717 = vunpack.c.l.s4 1966171168
    %v1718 = vunpack.c.0.s8 %v1717
    %v1719 = vlaneseq
    %v1720 = vshrl.u32 %v1719, 7
    %v1721 = vsub.s32 %v1718, %v1720
    %v1722 = vrot.slane %v1674, %v1721
    %v1724 = vunpack.c.l.s4 1966171168
    %v1725 = vunpack.c.0.s8 %v1724
    %v1726 = vlaneseq
    %v1727 = vshrl.u32 %v1726, 7
    %v1728 = vsub.s32 %v1725, %v1727
    %v1729 = vrot.slane %v1681, %v1728
    %v1731 = vunpack.c.l.s4 1966171168
    %v1732 = vunpack.c.0.s8 %v1731
    %v1733 = vlaneseq
    %v1734 = vshrl.u32 %v1733, 7
    %v1735 = vsub.s32 %v1732, %v1734
    %v1736 = vrot.slane %v1686, %v1735
    %v1738 = vunpack.c.l.s4 1966171168
    %v1739 = vunpack.c.0.s8 %v1738
    %v1740 = vlaneseq
    %v1741 = vshrl.u32 %v1740, 7
    %v1742 = vsub.s32 %v1739, %v1741
    %v1743 = vrot.slane %v1687, %v1742
    %v1744 = vcombine.low %v1694, %v1722
    %v1745 = vcombine.high %v1694, %v1722
    %v1746 = vcombine.low %v1701, %v1729
    %v1747 = vcombine.high %v1701, %v1729
    %v1748 = vcombine.low %v1708, %v1736
    %v1749 = vcombine.high %v1708, %v1736
    %v1750 = vcombine.low %v1715, %v1743
    %v1751 = vcombine.high %v1715, %v1743
    %v1752 = vlaneseq
    %v1753 = vshrl.u32 %v1752, 7
    %v1754 = vsub.s32 0, %v1753
    %v1755 = vrot.slane %v1744, %v1754
    %v1756 = vlaneseq
    %v1757 = vshrl.u32 %v1756, 7
    %v1758 = vsub.s32 1, %v1757
    %v1759 = vrot.slane %v1744, %v1758
    %v1760 = vlaneseq
    %v1761 = vshrl.u32 %v1760, 7
    %v1762 = vsub.s32 2, %v1761
    %v1763 = vrot.slane %v1744, %v1762
    %v1764 = vlaneseq
    %v1765 = vshrl.u32 %v1764, 7
    %v1766 = vsub.s32 3, %v1765
    %v1767 = vrot.slane %v1744, %v1766
    %v1768 = vlaneseq
    %v1769 = vshrl.u32 %v1768, 7
    %v1770 = vsub.s32 4, %v1769
    %v1771 = vrot.slane %v1744, %v1770
    %v1772 = vlaneseq
    %v1773 = vshrl.u32 %v1772, 7
    %v1774 = vsub.s32 0, %v1773
    %v1775 = vrot.slane %v1748, %v1774
    %v1776 = vlaneseq
    %v1777 = vshrl.u32 %v1776, 7
    %v1778 = vsub.s32 1, %v1777
    %v1779 = vrot.slane %v1748, %v1778
    %v1780 = vlaneseq
    %v1781 = vshrl.u32 %v1780, 7
    %v1782 = vsub.s32 2, %v1781
    %v1783 = vrot.slane %v1748, %v1782
    %v1784 = vlaneseq
    %v1785 = vshrl.u32 %v1784, 7
    %v1786 = vsub.s32 3, %v1785
    %v1787 = vrot.slane %v1748, %v1786
    %v1788 = vlaneseq
    %v1789 = vshrl.u32 %v1788, 7
    %v1790 = vsub.s32 4, %v1789
    %v1791 = vrot.slane %v1748, %v1790
    %v1792 = vlaneseq
    %v1793 = vshrl.u32 %v1792, 7
    %v1794 = vsub.s32 0, %v1793
    %v1795 = vrot.slane %v1745, %v1794
    %v1796 = vlaneseq
    %v1797 = vshrl.u32 %v1796, 7
    %v1798 = vsub.s32 1, %v1797
    %v1799 = vrot.slane %v1745, %v1798
    %v1800 = vlaneseq
    %v1801 = vshrl.u32 %v1800, 7
    %v1802 = vsub.s32 2, %v1801
    %v1803 = vrot.slane %v1745, %v1802
    %v1804 = vlaneseq
    %v1805 = vshrl.u32 %v1804, 7
    %v1806 = vsub.s32 3, %v1805
    %v1807 = vrot.slane %v1745, %v1806
    %v1808 = vlaneseq
    %v1809 = vshrl.u32 %v1808, 7
    %v1810 = vsub.s32 4, %v1809
    %v1811 = vrot.slane %v1745, %v1810
    %v1812 = vlaneseq
    %v1813 = vshrl.u32 %v1812, 7
    %v1814 = vsub.s32 0, %v1813
    %v1815 = vrot.slane %v1749, %v1814
    %v1816 = vlaneseq
    %v1817 = vshrl.u32 %v1816, 7
    %v1818 = vsub.s32 1, %v1817
    %v1819 = vrot.slane %v1749, %v1818
    %v1820 = vlaneseq
    %v1821 = vshrl.u32 %v1820, 7
    %v1822 = vsub.s32 2, %v1821
    %v1823 = vrot.slane %v1749, %v1822
    %v1824 = vlaneseq
    %v1825 = vshrl.u32 %v1824, 7
    %v1826 = vsub.s32 3, %v1825
    %v1827 = vrot.slane %v1749, %v1826
    %v1828 = vlaneseq
    %v1829 = vshrl.u32 %v1828, 7
    %v1830 = vsub.s32 4, %v1829
    %v1831 = vrot.slane %v1749, %v1830
    %v1832 = vlaneseq
    %v1833 = vshrl.u32 %v1832, 7
    %v1834 = vsub.s32 0, %v1833
    %v1835 = vrot.slane %v1746, %v1834
    %v1836 = vlaneseq
    %v1837 = vshrl.u32 %v1836, 7
    %v1838 = vsub.s32 1, %v1837
    %v1839 = vrot.slane %v1746, %v1838
    %v1840 = vlaneseq
    %v1841 = vshrl.u32 %v1840, 7
    %v1842 = vsub.s32 2, %v1841
    %v1843 = vrot.slane %v1746, %v1842
    %v1844 = vlaneseq
    %v1845 = vshrl.u32 %v1844, 7
    %v1846 = vsub.s32 3, %v1845
    %v1847 = vrot.slane %v1746, %v1846
    %v1848 = vlaneseq
    %v1849 = vshrl.u32 %v1848, 7
    %v1850 = vsub.s32 4, %v1849
    %v1851 = vrot.slane %v1746, %v1850
    %v1852 = vlaneseq
    %v1853 = vshrl.u32 %v1852, 7
    %v1854 = vsub.s32 0, %v1853
    %v1855 = vrot.slane %v1750, %v1854
    %v1856 = vlaneseq
    %v1857 = vshrl.u32 %v1856, 7
    %v1858 = vsub.s32 1, %v1857
    %v1859 = vrot.slane %v1750, %v1858
    %v1860 = vlaneseq
    %v1861 = vshrl.u32 %v1860, 7
    %v1862 = vsub.s32 2, %v1861
    %v1863 = vrot.slane %v1750, %v1862
    %v1864 = vlaneseq
    %v1865 = vshrl.u32 %v1864, 7
    %v1866 = vsub.s32 3, %v1865
    %v1867 = vrot.slane %v1750, %v1866
    %v1868 = vlaneseq
    %v1869 = vshrl.u32 %v1868, 7
    %v1870 = vsub.s32 4, %v1869
    %v1871 = vrot.slane %v1750, %v1870
    %v1872 = vlaneseq
    %v1873 = vshrl.u32 %v1872, 7
    %v1874 = vsub.s32 0, %v1873
    %v1875 = vrot.slane %v1747, %v1874
    %v1876 = vlaneseq
    %v1877 = vshrl.u32 %v1876, 7
    %v1878 = vsub.s32 1, %v1877
    %v1879 = vrot.slane %v1747, %v1878
    %v1880 = vlaneseq
    %v1881 = vshrl.u32 %v1880, 7
    %v1882 = vsub.s32 2, %v1881
    %v1883 = vrot.slane %v1747, %v1882
    %v1884 = vlaneseq
    %v1885 = vshrl.u32 %v1884, 7
    %v1886 = vsub.s32 3, %v1885
    %v1887 = vrot.slane %v1747, %v1886
    %v1888 = vlaneseq
    %v1889 = vshrl.u32 %v1888, 7
    %v1890 = vsub.s32 4, %v1889
    %v1891 = vrot.slane %v1747, %v1890
    %v1892 = vlaneseq
    %v1893 = vshrl.u32 %v1892, 7
    %v1894 = vsub.s32 0, %v1893
    %v1895 = vrot.slane %v1751, %v1894
    %v1896 = vlaneseq
    %v1897 = vshrl.u32 %v1896, 7
    %v1898 = vsub.s32 1, %v1897
    %v1899 = vrot.slane %v1751, %v1898
    %v1900 = vlaneseq
    %v1901 = vshrl.u32 %v1900, 7
    %v1902 = vsub.s32 2, %v1901
    %v1903 = vrot.slane %v1751, %v1902
    %v1904 = vlaneseq
    %v1905 = vshrl.u32 %v1904, 7
    %v1906 = vsub.s32 3, %v1905
    %v1907 = vrot.slane %v1751, %v1906
    %v1908 = vlaneseq
    %v1909 = vshrl.u32 %v1908, 7
    %v1910 = vsub.s32 4, %v1909
    %v1911 = vrot.slane %v1751, %v1910
    %v1952 = vmul.f32 %v1755, %v132
    %v1953 = vmul.f32 %v1759, %v501
    %v1954 = vmul.f32 %v1763, %v133
    %v1955 = vmul.f32 %v1767, %v502
    %v1956 = vmul.f32 %v1771, %v134
    %v1957 = vmul.f32 %v1775, %v135
    %v1958 = vmul.f32 %v1779, %v503
    %v1959 = vmul.f32 %v1783, %v136
    %v1960 = vmul.f32 %v1787, %v504
    %v1961 = vmul.f32 %v1791, %v137
    %v1962 = vmul.f32 %v1795, %v138
    %v1963 = vmul.f32 %v1799, %v505
    %v1964 = vmul.f32 %v1803, %v139
    %v1965 = vmul.f32 %v1807, %v506
    %v1966 = vmul.f32 %v1811, %v140
    %v1967 = vmul.f32 %v1815, %v141
    %v1968 = vmul.f32 %v1819, %v507
    %v1969 = vmul.f32 %v1823, %v142
    %v1970 = vmul.f32 %v1827, %v508
    %v1971 = vmul.f32 %v1831, %v143
    %v1972 = vmul.f32 %v1835, %v144
    %v1973 = vmul.f32 %v1839, %v509
    %v1974 = vmul.f32 %v1843, %v145
    %v1975 = vmul.f32 %v1847, %v510
    %v1976 = vmul.f32 %v1851, %v146
    %v1977 = vmul.f32 %v1855, %v147
    %v1978 = vmul.f32 %v1859, %v511
    %v1979 = vmul.f32 %v1863, %v148
    %v1980 = vmul.f32 %v1867, %v512
    %v1981 = vmul.f32 %v1871, %v149
    %v1982 = vmul.f32 %v1875, %v150
    %v1983 = vmul.f32 %v1879, %v513
    %v1984 = vmul.f32 %v1883, %v151
    %v1985 = vmul.f32 %v1887, %v514
    %v1986 = vmul.f32 %v1891, %v152
    %v1987 = vmul.f32 %v1895, %v153
    %v1988 = vmul.f32 %v1899, %v515
    %v1989 = vmul.f32 %v1903, %v154
    %v1990 = vmul.f32 %v1907, %v516
    %v1991 = vmul.f32 %v1911, %v155
    %v1992 = vsel %vm573, %v1952, 0.0
    %v1993 = vsel %vm573, %v1953, 0.0
    %v1994 = vadd.f32 %v1992, %v1993
    %v1995 = vsel %vm573, %v1954, 0.0
    %v1996 = vadd.f32 %v1994, %v1995
    %v1997 = vsel %vm573, %v1955, 0.0
    %v1998 = vadd.f32 %v1996, %v1997
    %v1999 = vsel %vm573, %v1956, 0.0
    %v2000 = vadd.f32 %v1998, %v1999
    %2001 = vadd.xlane.f32.xlu0 %v2000
    %v2002 = vpop.xlane.xlu0 %2001
    %v2003 = vsel %vm573, %v1957, 0.0
    %v2004 = vsel %vm573, %v1958, 0.0
    %v2005 = vadd.f32 %v2003, %v2004
    %v2006 = vsel %vm573, %v1959, 0.0
    %v2007 = vadd.f32 %v2005, %v2006
    %v2008 = vsel %vm573, %v1960, 0.0
    %v2009 = vadd.f32 %v2007, %v2008
    %v2010 = vsel %vm573, %v1961, 0.0
    %v2011 = vadd.f32 %v2009, %v2010
    %2012 = vadd.xlane.f32.xlu0 %v2011
    %v2013 = vpop.xlane.xlu0 %2012
    %v2014 = vsel %vm573, %v1962, 0.0
    %v2015 = vsel %vm573, %v1963, 0.0
    %v2016 = vadd.f32 %v2014, %v2015
    %v2017 = vsel %vm573, %v1964, 0.0
    %v2018 = vadd.f32 %v2016, %v2017
    %v2019 = vsel %vm573, %v1965, 0.0
    %v2020 = vadd.f32 %v2018, %v2019
    %v2021 = vsel %vm573, %v1966, 0.0
    %v2022 = vadd.f32 %v2020, %v2021
    %2023 = vadd.xlane.f32.xlu0 %v2022
    %v2024 = vpop.xlane.xlu0 %2023
    %v2025 = vsel %vm573, %v1967, 0.0
    %v2026 = vsel %vm573, %v1968, 0.0
    %v2027 = vadd.f32 %v2025, %v2026
    %v2028 = vsel %vm573, %v1969, 0.0
    %v2029 = vadd.f32 %v2027, %v2028
    %v2030 = vsel %vm573, %v1970, 0.0
    %v2031 = vadd.f32 %v2029, %v2030
    %v2032 = vsel %vm573, %v1971, 0.0
    %v2033 = vadd.f32 %v2031, %v2032
    %2034 = vadd.xlane.f32.xlu0 %v2033
    %v2035 = vpop.xlane.xlu0 %2034
    %v2036 = vsel %vm573, %v1972, 0.0
    %v2037 = vsel %vm573, %v1973, 0.0
    %v2038 = vadd.f32 %v2036, %v2037
    %v2039 = vsel %vm573, %v1974, 0.0
    %v2040 = vadd.f32 %v2038, %v2039
    %v2041 = vsel %vm573, %v1975, 0.0
    %v2042 = vadd.f32 %v2040, %v2041
    %v2043 = vsel %vm573, %v1976, 0.0
    %v2044 = vadd.f32 %v2042, %v2043
    %2045 = vadd.xlane.f32.xlu0 %v2044
    %v2046 = vpop.xlane.xlu0 %2045
    %v2047 = vsel %vm573, %v1977, 0.0
    %v2048 = vsel %vm573, %v1978, 0.0
    %v2049 = vadd.f32 %v2047, %v2048
    %v2050 = vsel %vm573, %v1979, 0.0
    %v2051 = vadd.f32 %v2049, %v2050
    %v2052 = vsel %vm573, %v1980, 0.0
    %v2053 = vadd.f32 %v2051, %v2052
    %v2054 = vsel %vm573, %v1981, 0.0
    %v2055 = vadd.f32 %v2053, %v2054
    %2056 = vadd.xlane.f32.xlu0 %v2055
    %v2057 = vpop.xlane.xlu0 %2056
    %v2058 = vsel %vm573, %v1982, 0.0
    %v2059 = vsel %vm573, %v1983, 0.0
    %v2060 = vadd.f32 %v2058, %v2059
    %v2061 = vsel %vm573, %v1984, 0.0
    %v2062 = vadd.f32 %v2060, %v2061
    %v2063 = vsel %vm573, %v1985, 0.0
    %v2064 = vadd.f32 %v2062, %v2063
    %v2065 = vsel %vm573, %v1986, 0.0
    %v2066 = vadd.f32 %v2064, %v2065
    %2067 = vadd.xlane.f32.xlu0 %v2066
    %v2068 = vpop.xlane.xlu0 %2067
    %v2069 = vsel %vm573, %v1987, 0.0
    %v2070 = vsel %vm573, %v1988, 0.0
    %v2071 = vadd.f32 %v2069, %v2070
    %v2072 = vsel %vm573, %v1989, 0.0
    %v2073 = vadd.f32 %v2071, %v2072
    %v2074 = vsel %vm573, %v1990, 0.0
    %v2075 = vadd.f32 %v2073, %v2074
    %v2076 = vsel %vm573, %v1991, 0.0
    %v2077 = vadd.f32 %v2075, %v2076
    %2078 = vadd.xlane.f32.xlu0 %v2077
    %v2079 = vpop.xlane.xlu0 %2078
    %v2080 = vadd.f32 %v2002, %v669
    %v2081 = vadd.f32 %v2013, %v676
    %v2082 = vadd.f32 %v2024, %v683
    %v2083 = vadd.f32 %v2035, %v690
    %v2084 = vadd.f32 %v2046, %v697
    %v2085 = vadd.f32 %v2057, %v704
    %v2086 = vadd.f32 %v2068, %v711
    %v2087 = vadd.f32 %v2079, %v718
    %v2088 = vmul.f32 %v2080, %v742
    %v2089 = vmul.f32 %v2081, %v742
    %v2090 = vmul.f32 %v2082, %v742
    %v2091 = vmul.f32 %v2083, %v742
    %v2092 = vmul.f32 %v2084, %v742
    %v2093 = vmul.f32 %v2085, %v742
    %v2094 = vmul.f32 %v2086, %v742
    %v2095 = vmul.f32 %v2087, %v742
    %v2097 = vlaneseq
    %v2098 = vshrl.u32 %v2097, 7
    %v2099 = vsub.s32 0, %v2098
    %v2100 = vrot.slane %v1629, %v2099
    %2102 = vbcast.lane.b32.xlu0 %v2100, 256
    %v2103 = vpop.permute.xlu0 %2102
    %v2104 = vlaneseq
    %v2105 = vshrl.u32 %v2104, 7
    %v2106 = vsub.s32 1, %v2105
    %v2107 = vrot.slane %v1629, %v2106
    %2109 = vbcast.lane.b32.xlu0 %v2107, 256
    %v2110 = vpop.permute.xlu0 %2109
    %v2111 = vlaneseq
    %v2112 = vshrl.u32 %v2111, 7
    %v2113 = vsub.s32 2, %v2112
    %v2114 = vrot.slane %v1629, %v2113
    %2116 = vbcast.lane.b32.xlu0 %v2114, 256
    %v2117 = vpop.permute.xlu0 %2116
    %v2118 = vlaneseq
    %v2119 = vshrl.u32 %v2118, 7
    %v2120 = vsub.s32 3, %v2119
    %v2121 = vrot.slane %v1629, %v2120
    %2123 = vbcast.lane.b32.xlu0 %v2121, 256
    %v2124 = vpop.permute.xlu0 %2123
    %v2125 = vlaneseq
    %v2126 = vshrl.u32 %v2125, 7
    %v2127 = vsub.s32 4, %v2126
    %v2128 = vrot.slane %v1629, %v2127
    %2130 = vbcast.lane.b32.xlu0 %v2128, 256
    %v2131 = vpop.permute.xlu0 %2130
    %v2132 = vlaneseq
    %v2133 = vshrl.u32 %v2132, 7
    %v2134 = vsub.s32 5, %v2133
    %v2135 = vrot.slane %v1629, %v2134
    %2137 = vbcast.lane.b32.xlu0 %v2135, 256
    %v2138 = vpop.permute.xlu0 %2137
    %v2139 = vlaneseq
    %v2140 = vshrl.u32 %v2139, 7
    %v2141 = vsub.s32 6, %v2140
    %v2142 = vrot.slane %v1629, %v2141
    %2144 = vbcast.lane.b32.xlu0 %v2142, 256
    %v2145 = vpop.permute.xlu0 %2144
    %v2146 = vlaneseq
    %v2147 = vshrl.u32 %v2146, 7
    %v2148 = vsub.s32 7, %v2147
    %v2149 = vrot.slane %v1629, %v2148
    %2151 = vbcast.lane.b32.xlu0 %v2149, 256
    %v2152 = vpop.permute.xlu0 %2151
    %v2161 = vadd.f32 %v2088, %v2103
    %v2162 = vadd.f32 %v2089, %v2110
    %v2163 = vadd.f32 %v2090, %v2117
    %v2164 = vadd.f32 %v2091, %v2124
    %v2165 = vadd.f32 %v2092, %v2131
    %v2166 = vadd.f32 %v2093, %v2138
    %v2167 = vadd.f32 %v2094, %v2145
    %v2168 = vadd.f32 %v2095, %v2152
    %2177 = vset.pattern.permute.xlu0 0
    %2178 = vperm.xlu0 %2177, %v2161
    %v2179 = vpop.permute.xlu0 %2178
    %2180 = vset.pattern.permute.xlu0 0
    %2181 = vperm.xlu0 %2180, %v2162
    %v2182 = vpop.permute.xlu0 %2181
    %2183 = vset.pattern.permute.xlu0 0
    %2184 = vperm.xlu0 %2183, %v2163
    %v2185 = vpop.permute.xlu0 %2184
    %2186 = vset.pattern.permute.xlu0 0
    %2187 = vperm.xlu0 %2186, %v2164
    %v2188 = vpop.permute.xlu0 %2187
    %2189 = vset.pattern.permute.xlu0 0
    %2190 = vperm.xlu0 %2189, %v2165
    %v2191 = vpop.permute.xlu0 %2190
    %2192 = vset.pattern.permute.xlu0 0
    %2193 = vperm.xlu0 %2192, %v2166
    %v2194 = vpop.permute.xlu0 %2193
    %2195 = vset.pattern.permute.xlu0 0
    %2196 = vperm.xlu0 %2195, %v2167
    %v2197 = vpop.permute.xlu0 %2196
    %2198 = vset.pattern.permute.xlu0 0
    %2199 = vperm.xlu0 %2198, %v2168
    %v2200 = vpop.permute.xlu0 %2199
    %v2201 = vlaneseq
    %v2202 = vshrl.u32 %v2201, 7
    %v2203 = vsub.s32 %v858, %v2202
    %v2204 = vrot.slane %v2179, %v2203
    %v2205 = vlaneseq
    %v2206 = vshrl.u32 %v2205, 7
    %v2207 = vsub.s32 %v858, %v2206
    %v2208 = vrot.slane %v2182, %v2207
    %v2209 = vlaneseq
    %v2210 = vshrl.u32 %v2209, 7
    %v2211 = vsub.s32 %v858, %v2210
    %v2212 = vrot.slane %v2185, %v2211
    %v2213 = vlaneseq
    %v2214 = vshrl.u32 %v2213, 7
    %v2215 = vsub.s32 %v858, %v2214
    %v2216 = vrot.slane %v2188, %v2215
    %v2217 = vlaneseq
    %v2218 = vshrl.u32 %v2217, 7
    %v2219 = vsub.s32 %v858, %v2218
    %v2220 = vrot.slane %v2191, %v2219
    %v2221 = vlaneseq
    %v2222 = vshrl.u32 %v2221, 7
    %v2223 = vsub.s32 %v858, %v2222
    %v2224 = vrot.slane %v2194, %v2223
    %v2225 = vlaneseq
    %v2226 = vshrl.u32 %v2225, 7
    %v2227 = vsub.s32 %v858, %v2226
    %v2228 = vrot.slane %v2197, %v2227
    %v2229 = vlaneseq
    %v2230 = vshrl.u32 %v2229, 7
    %v2231 = vsub.s32 %v858, %v2230
    %v2232 = vrot.slane %v2200, %v2231
    %v2233 = vsel %vm891, %v2208, %v2204
    %v2234 = vsel %vm893, %v2212, %v2233
    %v2235 = vsel %vm895, %v2216, %v2234
    %v2236 = vsel %vm897, %v2220, %v2235
    %v2237 = vsel %vm899, %v2224, %v2236
    %v2238 = vsel %vm901, %v2228, %v2237
    %v2239 = vsel %vm903, %v2232, %v2238
    %s2241 = scalar_lea.vmem %s9, 8
    %2242 = vst.msk [vmem:[%s2241] sm:$0xff] %vm906, %v2239
    %s2243 = scalar_lea.vmem %s0, 80
    %v2244 = vld [vmem:[%s2243] sm:$0xff]
    %v2245 = vld [vmem:[%s2243 + $0x8] sm:$0xff]
    %v2246 = vld [vmem:[%s2243 + $0x10] sm:$0xff]
    %v2247 = vld [vmem:[%s2243 + $0x18] sm:$0xff]
    %v2248 = vld [vmem:[%s2243 + $0x20] sm:$0xff]
    %v2249 = vpack.c.bf16 %v2244, %v1503
    %v2250 = vpack.c.bf16 %v2245, %v1504
    %v2251 = vpack.c.bf16 %v2246, %v1505
    %v2252 = vpack.c.bf16 %v2247, %v1506
    %v2253 = vpack.c.bf16 %v2248, %v1507
    %2254 = vmatprep.subr.bf16.mxu0 %v1171
    %2255 = vmatpush1.bf16.msra.mxu0 %v1170
    %2256 = vmatprep.subr.bf16.mxu0 %v1173
    %2257 = vmatpush1.bf16.msra.mxu0 %v1172
    %2258 = vmatprep.subr.bf16.mxu0 %v1175
    %2259 = vmatpush1.bf16.msra.mxu0 %v1174
    %2260 = vmatprep.subr.bf16.mxu0 %v1177
    %2261 = vmatpush1.bf16.msra.mxu0 %v1176
    %2262 = vmatprep.subr.bf16.mxu0 %v1179
    %2263 = vmatpush1.bf16.msra.mxu0 %v1178
    %2264 = vmatprep.subr.bf16.mxu0 %v1181
    %2265 = vmatpush1.bf16.msra.mxu0 %v1180
    %2266 = vmatprep.subr.bf16.mxu0 %v1183
    %2267 = vmatpush1.bf16.msra.mxu0 %v1182
    %2268 = vmatprep.subr.bf16.mxu0 %v1185
    %2269 = vmatpush1.bf16.msra.mxu0 %v1184
    %2270 = vmatprep.subr.bf16.mxu0 %v1187
    %2271 = vmatpush1.bf16.msra.mxu0 %v1186
    %2272 = vmatprep.subr.bf16.mxu0 %v1189
    %2273 = vmatpush1.bf16.msra.mxu0 %v1188
    %2274 = vmatprep.subr.bf16.mxu0 %v1191
    %2275 = vmatpush1.bf16.msra.mxu0 %v1190
    %2276 = vmatprep.subr.bf16.mxu0 %v1193
    %2277 = vmatpush1.bf16.msra.mxu0 %v1192
    %2278 = vmatprep.subr.bf16.mxu0 %v1195
    %2279 = vmatpush1.bf16.msra.mxu0 %v1194
    %2280 = vmatprep.subr.bf16.mxu0 %v1197
    %2281 = vmatpush1.bf16.msra.mxu0 %v1196
    %2282 = vmatprep.subr.bf16.mxu0 %v1199
    %2283 = vmatpush1.bf16.msra.mxu0 %v1198
    %2284 = vmatprep.subr.bf16.mxu0 %v1201
    %2285 = vmatpush1.bf16.msra.mxu0 %v1200
    %2286 = vmatprep.mubr.bf16.mxu0 %v2250
    %2287 = vmatmul.mubr.bf16.gmra.mrb[0].mxu0 %v2249
    %v2288 = vpop.f32.mrb[0].mxu0
    %v2289 = vadd.f32 %v923, %v2288
    %v2290 = vpop.f32.mrb[0].mxu0
    %v2291 = vadd.f32 %v927, %v2290
    %v2292 = vpop.f32.mrb[0].mxu0
    %v2293 = vadd.f32 %v923, %v2292
    %v2294 = vpop.f32.mrb[0].mxu0
    %v2295 = vadd.f32 %v927, %v2294
    %2296 = vdwg.mxu0
    %2297 = vmatprep.subr.bf16.mxu0 %v1203
    %2298 = vmatpush1.bf16.msra.mxu0 %v1202
    %2299 = vmatprep.subr.bf16.mxu0 %v1205
    %2300 = vmatpush1.bf16.msra.mxu0 %v1204
    %2301 = vmatprep.subr.bf16.mxu0 %v1207
    %2302 = vmatpush1.bf16.msra.mxu0 %v1206
    %2303 = vmatprep.subr.bf16.mxu0 %v1209
    %2304 = vmatpush1.bf16.msra.mxu0 %v1208
    %2305 = vmatprep.subr.bf16.mxu0 %v1211
    %2306 = vmatpush1.bf16.msra.mxu0 %v1210
    %2307 = vmatprep.subr.bf16.mxu0 %v1213
    %2308 = vmatpush1.bf16.msra.mxu0 %v1212
    %2309 = vmatprep.subr.bf16.mxu0 %v1215
    %2310 = vmatpush1.bf16.msra.mxu0 %v1214
    %2311 = vmatprep.subr.bf16.mxu0 %v1217
    %2312 = vmatpush1.bf16.msra.mxu0 %v1216
    %2313 = vmatprep.subr.bf16.mxu0 %v1219
    %2314 = vmatpush1.bf16.msra.mxu0 %v1218
    %2315 = vmatprep.subr.bf16.mxu0 %v1221
    %2316 = vmatpush1.bf16.msra.mxu0 %v1220
    %2317 = vmatprep.subr.bf16.mxu0 %v1223
    %2318 = vmatpush1.bf16.msra.mxu0 %v1222
    %2319 = vmatprep.subr.bf16.mxu0 %v1225
    %2320 = vmatpush1.bf16.msra.mxu0 %v1224
    %2321 = vmatprep.subr.bf16.mxu0 %v1227
    %2322 = vmatpush1.bf16.msra.mxu0 %v1226
    %2323 = vmatprep.subr.bf16.mxu0 %v1229
    %2324 = vmatpush1.bf16.msra.mxu0 %v1228
    %2325 = vmatprep.subr.bf16.mxu0 %v1231
    %2326 = vmatpush1.bf16.msra.mxu0 %v1230
    %2327 = vmatprep.subr.bf16.mxu0 %v1233
    %2328 = vmatpush1.bf16.msra.mxu0 %v1232
    %2329 = vmatprep.mubr.bf16.mxu0 %v2252
    %2330 = vmatmul.mubr.bf16.gmra.mrb[0].mxu0 %v2251
    %v2331 = vpop.f32.mrb[0].mxu0
    %v2332 = vadd.f32 %v2289, %v2331
    %v2333 = vpop.f32.mrb[0].mxu0
    %v2334 = vadd.f32 %v2291, %v2333
    %v2335 = vpop.f32.mrb[0].mxu0
    %v2336 = vadd.f32 %v2293, %v2335
    %v2337 = vpop.f32.mrb[0].mxu0
    %v2338 = vadd.f32 %v2295, %v2337
    %2339 = vdwg.mxu0
    %2340 = vmatprep.subr.bf16.mxu0 %v1235
    %2341 = vmatpush1.bf16.msra.mxu0 %v1234
    %2342 = vmatprep.subr.bf16.mxu0 %v1237
    %2343 = vmatpush1.bf16.msra.mxu0 %v1236
    %2344 = vmatprep.subr.bf16.mxu0 %v1239
    %2345 = vmatpush1.bf16.msra.mxu0 %v1238
    %2346 = vmatprep.subr.bf16.mxu0 %v1241
    %2347 = vmatpush1.bf16.msra.mxu0 %v1240
    %2348 = vmatprep.subr.bf16.mxu0 %v1243
    %2349 = vmatpush1.bf16.msra.mxu0 %v1242
    %2350 = vmatprep.subr.bf16.mxu0 %v1245
    %2351 = vmatpush1.bf16.msra.mxu0 %v1244
    %2352 = vmatprep.subr.bf16.mxu0 %v1247
    %2353 = vmatpush1.bf16.msra.mxu0 %v1246
    %2354 = vmatprep.subr.bf16.mxu0 %v1249
    %2355 = vmatpush1.bf16.msra.mxu0 %v1248
    %2356 = vmatprep.subr.bf16.mxu0 0
    %2357 = vmatpush1.bf16.msra.mxu0 0
    %2358 = vmatprep.subr.bf16.mxu0 0
    %2359 = vmatpush1.bf16.msra.mxu0 0
    %2360 = vmatprep.subr.bf16.mxu0 0
    %2361 = vmatpush1.bf16.msra.mxu0 0
    %2362 = vmatprep.subr.bf16.mxu0 0
    %2363 = vmatpush1.bf16.msra.mxu0 0
    %2364 = vmatprep.subr.bf16.mxu0 0
    %2365 = vmatpush1.bf16.msra.mxu0 0
    %2366 = vmatprep.subr.bf16.mxu0 0
    %2367 = vmatpush1.bf16.msra.mxu0 0
    %2368 = vmatprep.subr.bf16.mxu0 0
    %2369 = vmatpush1.bf16.msra.mxu0 0
    %2370 = vmatprep.subr.bf16.mxu0 0
    %2371 = vmatpush1.bf16.msra.mxu0 0
    %2372 = vmatprep.mubr.bf16.mxu0 0
    %2373 = vmatmul.mubr.bf16.gmra.mrb[0].mxu0 %v2253
    %v2374 = vpop.f32.mrb[0].mxu0
    %v2375 = vadd.f32 %v2332, %v2374
    %v2376 = vpop.f32.mrb[0].mxu0
    %v2377 = vadd.f32 %v2334, %v2376
    %v2378 = vpop.f32.mrb[0].mxu0
    %v2379 = vadd.f32 %v2336, %v2378
    %v2380 = vpop.f32.mrb[0].mxu0
    %v2381 = vadd.f32 %v2338, %v2380
    %2382 = vdwg.mxu0
    %v2383 = vtanh.pop %v2375
    %v2384 = vtanh.pop %v2377
    %v2385 = vtanh.pop %v2379
    %v2386 = vtanh.pop %v2381
    %v2387 = vmul.f32 %v2383, %v130
    %v2388 = vmul.f32 %v2384, %v131
    %v2389 = vmul.f32 %v2385, %v130
    %v2390 = vmul.f32 %v2386, %v131
    %v2391 = vadd.f32 %v2387, %v2388
    %2392 = vadd.xlane.f32.xlu0 %v2391
    %v2393 = vpop.xlane.xlu0 %2392
    %v2394 = vadd.f32 %v2389, %v2390
    %2395 = vadd.xlane.f32.xlu0 %v2394
    %v2396 = vpop.xlane.xlu0 %2395
    %v2397 = vadd.f32 %v2393, %v129
    %v2398 = vadd.f32 %v2396, %v129
    %v2399 = vsub.f32 %v2397, %v2398
    %v2400 = vxor.u32 %v2399, 2147483648
    %v2401 = vmul.f32 %v2400, 1.442695
    %v2402 = vpow.pop %v2401
    %v2403 = vadd.f32 %v2402, 1.0
    %v2404 = vrcp.pop %v2403
    %v2405 = vmul.f32 1.0, %v2404
    %v2406 = vsub.f32 1.0, %v2405
    %2408 = vset.pattern.permute.xlu0 0
    %2409 = vperm.xlu0 %2408, %v2405
    %v2410 = vpop.permute.xlu0 %2409
    %v2412 = vmul.f32 %v1503, %v2410
    %v2413 = vmul.f32 %v1504, %v2410
    %v2414 = vmul.f32 %v1505, %v2410
    %v2415 = vmul.f32 %v1506, %v2410
    %v2416 = vmul.f32 %v1507, %v2410
    %2418 = vset.pattern.permute.xlu0 0
    %2419 = vperm.xlu0 %2418, %v2406
    %v2420 = vpop.permute.xlu0 %2419
    %v2422 = vmul.f32 %v2244, %v2420
    %v2423 = vmul.f32 %v2245, %v2420
    %v2424 = vmul.f32 %v2246, %v2420
    %v2425 = vmul.f32 %v2247, %v2420
    %v2426 = vmul.f32 %v2248, %v2420
    %v2427 = vadd.f32 %v2412, %v2422
    %v2428 = vadd.f32 %v2413, %v2423
    %v2429 = vadd.f32 %v2414, %v2424
    %v2430 = vadd.f32 %v2415, %v2425
    %v2431 = vadd.f32 %v2416, %v2426
    %v2432 = vmul.f32 %v1629, %v2410
    %v2433 = vlaneseq
    %v2434 = vshrl.u32 %v2433, 7
    %v2435 = vsub.s32 0, %v2434
    %v2436 = vrot.slane %v2420, %v2435
    %v2437 = vlaneseq
    %v2438 = vshrl.u32 %v2437, 7
    %v2439 = vsub.s32 1, %v2438
    %v2440 = vrot.slane %v2420, %v2439
    %v2441 = vlaneseq
    %v2442 = vshrl.u32 %v2441, 7
    %v2443 = vsub.s32 2, %v2442
    %v2444 = vrot.slane %v2420, %v2443
    %v2445 = vlaneseq
    %v2446 = vshrl.u32 %v2445, 7
    %v2447 = vsub.s32 3, %v2446
    %v2448 = vrot.slane %v2420, %v2447
    %v2449 = vlaneseq
    %v2450 = vshrl.u32 %v2449, 7
    %v2451 = vsub.s32 4, %v2450
    %v2452 = vrot.slane %v2420, %v2451
    %v2453 = vlaneseq
    %v2454 = vshrl.u32 %v2453, 7
    %v2455 = vsub.s32 5, %v2454
    %v2456 = vrot.slane %v2420, %v2455
    %v2457 = vlaneseq
    %v2458 = vshrl.u32 %v2457, 7
    %v2459 = vsub.s32 6, %v2458
    %v2460 = vrot.slane %v2420, %v2459
    %v2461 = vlaneseq
    %v2462 = vshrl.u32 %v2461, 7
    %v2463 = vsub.s32 7, %v2462
    %v2464 = vrot.slane %v2420, %v2463
    %v2473 = vmul.f32 %v2161, %v2436
    %v2474 = vmul.f32 %v2162, %v2440
    %v2475 = vmul.f32 %v2163, %v2444
    %v2476 = vmul.f32 %v2164, %v2448
    %v2477 = vmul.f32 %v2165, %v2452
    %v2478 = vmul.f32 %v2166, %v2456
    %v2479 = vmul.f32 %v2167, %v2460
    %v2480 = vmul.f32 %v2168, %v2464
    %2489 = vset.pattern.permute.xlu0 0
    %2490 = vperm.xlu0 %2489, %v2473
    %v2491 = vpop.permute.xlu0 %2490
    %2492 = vset.pattern.permute.xlu0 0
    %2493 = vperm.xlu0 %2492, %v2474
    %v2494 = vpop.permute.xlu0 %2493
    %2495 = vset.pattern.permute.xlu0 0
    %2496 = vperm.xlu0 %2495, %v2475
    %v2497 = vpop.permute.xlu0 %2496
    %2498 = vset.pattern.permute.xlu0 0
    %2499 = vperm.xlu0 %2498, %v2476
    %v2500 = vpop.permute.xlu0 %2499
    %2501 = vset.pattern.permute.xlu0 0
    %2502 = vperm.xlu0 %2501, %v2477
    %v2503 = vpop.permute.xlu0 %2502
    %2504 = vset.pattern.permute.xlu0 0
    %2505 = vperm.xlu0 %2504, %v2478
    %v2506 = vpop.permute.xlu0 %2505
    %2507 = vset.pattern.permute.xlu0 0
    %2508 = vperm.xlu0 %2507, %v2479
    %v2509 = vpop.permute.xlu0 %2508
    %2510 = vset.pattern.permute.xlu0 0
    %2511 = vperm.xlu0 %2510, %v2480
    %v2512 = vpop.permute.xlu0 %2511
    %v2513 = vlaneseq
    %v2514 = vshrl.u32 %v2513, 7
    %v2515 = vsub.s32 %v858, %v2514
    %v2516 = vrot.slane %v2491, %v2515
    %v2517 = vlaneseq
    %v2518 = vshrl.u32 %v2517, 7
    %v2519 = vsub.s32 %v858, %v2518
    %v2520 = vrot.slane %v2494, %v2519
    %v2521 = vlaneseq
    %v2522 = vshrl.u32 %v2521, 7
    %v2523 = vsub.s32 %v858, %v2522
    %v2524 = vrot.slane %v2497, %v2523
    %v2525 = vlaneseq
    %v2526 = vshrl.u32 %v2525, 7
    %v2527 = vsub.s32 %v858, %v2526
    %v2528 = vrot.slane %v2500, %v2527
    %v2529 = vlaneseq
    %v2530 = vshrl.u32 %v2529, 7
    %v2531 = vsub.s32 %v858, %v2530
    %v2532 = vrot.slane %v2503, %v2531
    %v2533 = vlaneseq
    %v2534 = vshrl.u32 %v2533, 7
    %v2535 = vsub.s32 %v858, %v2534
    %v2536 = vrot.slane %v2506, %v2535
    %v2537 = vlaneseq
    %v2538 = vshrl.u32 %v2537, 7
    %v2539 = vsub.s32 %v858, %v2538
    %v2540 = vrot.slane %v2509, %v2539
    %v2541 = vlaneseq
    %v2542 = vshrl.u32 %v2541, 7
    %v2543 = vsub.s32 %v858, %v2542
    %v2544 = vrot.slane %v2512, %v2543
    %v2545 = vsel %vm891, %v2520, %v2516
    %v2546 = vsel %vm893, %v2524, %v2545
    %v2547 = vsel %vm895, %v2528, %v2546
    %v2548 = vsel %vm897, %v2532, %v2547
    %v2549 = vsel %vm899, %v2536, %v2548
    %v2550 = vsel %vm901, %v2540, %v2549
    %v2551 = vsel %vm903, %v2544, %v2550
    %v2553 = vadd.f32 %v2432, %v2551
    %v2559 = vcombine.low %v2427, %v2428
    %v2560 = vcombine.high %v2427, %v2428
    %v2561 = vcombine.low %v2429, %v2430
    %v2562 = vcombine.high %v2429, %v2430
    %v2563 = vcombine.high %v2431, %v2431
    %v2565 = vunpack.c.l.s4 1966171168
    %v2566 = vunpack.c.0.s8 %v2565
    %v2567 = vlaneseq
    %v2568 = vshrl.u32 %v2567, 7
    %v2569 = vsub.s32 %v2566, %v2568
    %v2570 = vrot.slane %v2559, %v2569
    %v2572 = vunpack.c.l.s4 1966171168
    %v2573 = vunpack.c.0.s8 %v2572
    %v2574 = vlaneseq
    %v2575 = vshrl.u32 %v2574, 7
    %v2576 = vsub.s32 %v2573, %v2575
    %v2577 = vrot.slane %v2560, %v2576
    %v2579 = vunpack.c.l.s4 1966171168
    %v2580 = vunpack.c.0.s8 %v2579
    %v2581 = vlaneseq
    %v2582 = vshrl.u32 %v2581, 7
    %v2583 = vsub.s32 %v2580, %v2582
    %v2584 = vrot.slane %v2561, %v2583
    %v2586 = vunpack.c.l.s4 1966171168
    %v2587 = vunpack.c.0.s8 %v2586
    %v2588 = vlaneseq
    %v2589 = vshrl.u32 %v2588, 7
    %v2590 = vsub.s32 %v2587, %v2589
    %v2591 = vrot.slane %v2562, %v2590
    %v2593 = vunpack.c.l.s4 1966171168
    %v2594 = vunpack.c.0.s8 %v2593
    %v2595 = vlaneseq
    %v2596 = vshrl.u32 %v2595, 7
    %v2597 = vsub.s32 %v2594, %v2596
    %v2598 = vrot.slane %v2431, %v2597
    %v2600 = vunpack.c.l.s4 1966171168
    %v2601 = vunpack.c.0.s8 %v2600
    %v2602 = vlaneseq
    %v2603 = vshrl.u32 %v2602, 7
    %v2604 = vsub.s32 %v2601, %v2603
    %v2605 = vrot.slane %v2563, %v2604
    %v2606 = vcombine.low %v2570, %v2584
    %v2607 = vcombine.high %v2570, %v2584
    %v2608 = vcombine.low %v2577, %v2591
    %v2609 = vcombine.high %v2577, %v2591
    %v2610 = vcombine.high %v2598, %v2598
    %v2611 = vcombine.high %v2605, %v2605
    %v2613 = vunpack.c.l.s4 1966171168
    %v2614 = vunpack.c.0.s8 %v2613
    %v2615 = vlaneseq
    %v2616 = vshrl.u32 %v2615, 7
    %v2617 = vsub.s32 %v2614, %v2616
    %v2618 = vrot.slane %v2606, %v2617
    %v2620 = vunpack.c.l.s4 1966171168
    %v2621 = vunpack.c.0.s8 %v2620
    %v2622 = vlaneseq
    %v2623 = vshrl.u32 %v2622, 7
    %v2624 = vsub.s32 %v2621, %v2623
    %v2625 = vrot.slane %v2608, %v2624
    %v2627 = vunpack.c.l.s4 1966171168
    %v2628 = vunpack.c.0.s8 %v2627
    %v2629 = vlaneseq
    %v2630 = vshrl.u32 %v2629, 7
    %v2631 = vsub.s32 %v2628, %v2630
    %v2632 = vrot.slane %v2607, %v2631
    %v2634 = vunpack.c.l.s4 1966171168
    %v2635 = vunpack.c.0.s8 %v2634
    %v2636 = vlaneseq
    %v2637 = vshrl.u32 %v2636, 7
    %v2638 = vsub.s32 %v2635, %v2637
    %v2639 = vrot.slane %v2609, %v2638
    %v2641 = vunpack.c.l.s4 1966171168
    %v2642 = vunpack.c.0.s8 %v2641
    %v2643 = vlaneseq
    %v2644 = vshrl.u32 %v2643, 7
    %v2645 = vsub.s32 %v2642, %v2644
    %v2646 = vrot.slane %v2598, %v2645
    %v2648 = vunpack.c.l.s4 1966171168
    %v2649 = vunpack.c.0.s8 %v2648
    %v2650 = vlaneseq
    %v2651 = vshrl.u32 %v2650, 7
    %v2652 = vsub.s32 %v2649, %v2651
    %v2653 = vrot.slane %v2605, %v2652
    %v2655 = vunpack.c.l.s4 1966171168
    %v2656 = vunpack.c.0.s8 %v2655
    %v2657 = vlaneseq
    %v2658 = vshrl.u32 %v2657, 7
    %v2659 = vsub.s32 %v2656, %v2658
    %v2660 = vrot.slane %v2610, %v2659
    %v2662 = vunpack.c.l.s4 1966171168
    %v2663 = vunpack.c.0.s8 %v2662
    %v2664 = vlaneseq
    %v2665 = vshrl.u32 %v2664, 7
    %v2666 = vsub.s32 %v2663, %v2665
    %v2667 = vrot.slane %v2611, %v2666
    %v2668 = vcombine.low %v2618, %v2646
    %v2669 = vcombine.high %v2618, %v2646
    %v2670 = vcombine.low %v2625, %v2653
    %v2671 = vcombine.high %v2625, %v2653
    %v2672 = vcombine.low %v2632, %v2660
    %v2673 = vcombine.high %v2632, %v2660
    %v2674 = vcombine.low %v2639, %v2667
    %v2675 = vcombine.high %v2639, %v2667
    %v2676 = vlaneseq
    %v2677 = vshrl.u32 %v2676, 7
    %v2678 = vsub.s32 0, %v2677
    %v2679 = vrot.slane %v2668, %v2678
    %v2680 = vlaneseq
    %v2681 = vshrl.u32 %v2680, 7
    %v2682 = vsub.s32 1, %v2681
    %v2683 = vrot.slane %v2668, %v2682
    %v2684 = vlaneseq
    %v2685 = vshrl.u32 %v2684, 7
    %v2686 = vsub.s32 2, %v2685
    %v2687 = vrot.slane %v2668, %v2686
    %v2688 = vlaneseq
    %v2689 = vshrl.u32 %v2688, 7
    %v2690 = vsub.s32 3, %v2689
    %v2691 = vrot.slane %v2668, %v2690
    %v2692 = vlaneseq
    %v2693 = vshrl.u32 %v2692, 7
    %v2694 = vsub.s32 4, %v2693
    %v2695 = vrot.slane %v2668, %v2694
    %v2696 = vlaneseq
    %v2697 = vshrl.u32 %v2696, 7
    %v2698 = vsub.s32 0, %v2697
    %v2699 = vrot.slane %v2672, %v2698
    %v2700 = vlaneseq
    %v2701 = vshrl.u32 %v2700, 7
    %v2702 = vsub.s32 1, %v2701
    %v2703 = vrot.slane %v2672, %v2702
    %v2704 = vlaneseq
    %v2705 = vshrl.u32 %v2704, 7
    %v2706 = vsub.s32 2, %v2705
    %v2707 = vrot.slane %v2672, %v2706
    %v2708 = vlaneseq
    %v2709 = vshrl.u32 %v2708, 7
    %v2710 = vsub.s32 3, %v2709
    %v2711 = vrot.slane %v2672, %v2710
    %v2712 = vlaneseq
    %v2713 = vshrl.u32 %v2712, 7
    %v2714 = vsub.s32 4, %v2713
    %v2715 = vrot.slane %v2672, %v2714
    %v2716 = vlaneseq
    %v2717 = vshrl.u32 %v2716, 7
    %v2718 = vsub.s32 0, %v2717
    %v2719 = vrot.slane %v2669, %v2718
    %v2720 = vlaneseq
    %v2721 = vshrl.u32 %v2720, 7
    %v2722 = vsub.s32 1, %v2721
    %v2723 = vrot.slane %v2669, %v2722
    %v2724 = vlaneseq
    %v2725 = vshrl.u32 %v2724, 7
    %v2726 = vsub.s32 2, %v2725
    %v2727 = vrot.slane %v2669, %v2726
    %v2728 = vlaneseq
    %v2729 = vshrl.u32 %v2728, 7
    %v2730 = vsub.s32 3, %v2729
    %v2731 = vrot.slane %v2669, %v2730
    %v2732 = vlaneseq
    %v2733 = vshrl.u32 %v2732, 7
    %v2734 = vsub.s32 4, %v2733
    %v2735 = vrot.slane %v2669, %v2734
    %v2736 = vlaneseq
    %v2737 = vshrl.u32 %v2736, 7
    %v2738 = vsub.s32 0, %v2737
    %v2739 = vrot.slane %v2673, %v2738
    %v2740 = vlaneseq
    %v2741 = vshrl.u32 %v2740, 7
    %v2742 = vsub.s32 1, %v2741
    %v2743 = vrot.slane %v2673, %v2742
    %v2744 = vlaneseq
    %v2745 = vshrl.u32 %v2744, 7
    %v2746 = vsub.s32 2, %v2745
    %v2747 = vrot.slane %v2673, %v2746
    %v2748 = vlaneseq
    %v2749 = vshrl.u32 %v2748, 7
    %v2750 = vsub.s32 3, %v2749
    %v2751 = vrot.slane %v2673, %v2750
    %v2752 = vlaneseq
    %v2753 = vshrl.u32 %v2752, 7
    %v2754 = vsub.s32 4, %v2753
    %v2755 = vrot.slane %v2673, %v2754
    %v2756 = vlaneseq
    %v2757 = vshrl.u32 %v2756, 7
    %v2758 = vsub.s32 0, %v2757
    %v2759 = vrot.slane %v2670, %v2758
    %v2760 = vlaneseq
    %v2761 = vshrl.u32 %v2760, 7
    %v2762 = vsub.s32 1, %v2761
    %v2763 = vrot.slane %v2670, %v2762
    %v2764 = vlaneseq
    %v2765 = vshrl.u32 %v2764, 7
    %v2766 = vsub.s32 2, %v2765
    %v2767 = vrot.slane %v2670, %v2766
    %v2768 = vlaneseq
    %v2769 = vshrl.u32 %v2768, 7
    %v2770 = vsub.s32 3, %v2769
    %v2771 = vrot.slane %v2670, %v2770
    %v2772 = vlaneseq
    %v2773 = vshrl.u32 %v2772, 7
    %v2774 = vsub.s32 4, %v2773
    %v2775 = vrot.slane %v2670, %v2774
    %v2776 = vlaneseq
    %v2777 = vshrl.u32 %v2776, 7
    %v2778 = vsub.s32 0, %v2777
    %v2779 = vrot.slane %v2674, %v2778
    %v2780 = vlaneseq
    %v2781 = vshrl.u32 %v2780, 7
    %v2782 = vsub.s32 1, %v2781
    %v2783 = vrot.slane %v2674, %v2782
    %v2784 = vlaneseq
    %v2785 = vshrl.u32 %v2784, 7
    %v2786 = vsub.s32 2, %v2785
    %v2787 = vrot.slane %v2674, %v2786
    %v2788 = vlaneseq
    %v2789 = vshrl.u32 %v2788, 7
    %v2790 = vsub.s32 3, %v2789
    %v2791 = vrot.slane %v2674, %v2790
    %v2792 = vlaneseq
    %v2793 = vshrl.u32 %v2792, 7
    %v2794 = vsub.s32 4, %v2793
    %v2795 = vrot.slane %v2674, %v2794
    %v2796 = vlaneseq
    %v2797 = vshrl.u32 %v2796, 7
    %v2798 = vsub.s32 0, %v2797
    %v2799 = vrot.slane %v2671, %v2798
    %v2800 = vlaneseq
    %v2801 = vshrl.u32 %v2800, 7
    %v2802 = vsub.s32 1, %v2801
    %v2803 = vrot.slane %v2671, %v2802
    %v2804 = vlaneseq
    %v2805 = vshrl.u32 %v2804, 7
    %v2806 = vsub.s32 2, %v2805
    %v2807 = vrot.slane %v2671, %v2806
    %v2808 = vlaneseq
    %v2809 = vshrl.u32 %v2808, 7
    %v2810 = vsub.s32 3, %v2809
    %v2811 = vrot.slane %v2671, %v2810
    %v2812 = vlaneseq
    %v2813 = vshrl.u32 %v2812, 7
    %v2814 = vsub.s32 4, %v2813
    %v2815 = vrot.slane %v2671, %v2814
    %v2816 = vlaneseq
    %v2817 = vshrl.u32 %v2816, 7
    %v2818 = vsub.s32 0, %v2817
    %v2819 = vrot.slane %v2675, %v2818
    %v2820 = vlaneseq
    %v2821 = vshrl.u32 %v2820, 7
    %v2822 = vsub.s32 1, %v2821
    %v2823 = vrot.slane %v2675, %v2822
    %v2824 = vlaneseq
    %v2825 = vshrl.u32 %v2824, 7
    %v2826 = vsub.s32 2, %v2825
    %v2827 = vrot.slane %v2675, %v2826
    %v2828 = vlaneseq
    %v2829 = vshrl.u32 %v2828, 7
    %v2830 = vsub.s32 3, %v2829
    %v2831 = vrot.slane %v2675, %v2830
    %v2832 = vlaneseq
    %v2833 = vshrl.u32 %v2832, 7
    %v2834 = vsub.s32 4, %v2833
    %v2835 = vrot.slane %v2675, %v2834
    %v2876 = vmul.f32 %v2679, %v132
    %v2877 = vmul.f32 %v2683, %v501
    %v2878 = vmul.f32 %v2687, %v133
    %v2879 = vmul.f32 %v2691, %v502
    %v2880 = vmul.f32 %v2695, %v134
    %v2881 = vmul.f32 %v2699, %v135
    %v2882 = vmul.f32 %v2703, %v503
    %v2883 = vmul.f32 %v2707, %v136
    %v2884 = vmul.f32 %v2711, %v504
    %v2885 = vmul.f32 %v2715, %v137
    %v2886 = vmul.f32 %v2719, %v138
    %v2887 = vmul.f32 %v2723, %v505
    %v2888 = vmul.f32 %v2727, %v139
    %v2889 = vmul.f32 %v2731, %v506
    %v2890 = vmul.f32 %v2735, %v140
    %v2891 = vmul.f32 %v2739, %v141
    %v2892 = vmul.f32 %v2743, %v507
    %v2893 = vmul.f32 %v2747, %v142
    %v2894 = vmul.f32 %v2751, %v508
    %v2895 = vmul.f32 %v2755, %v143
    %v2896 = vmul.f32 %v2759, %v144
    %v2897 = vmul.f32 %v2763, %v509
    %v2898 = vmul.f32 %v2767, %v145
    %v2899 = vmul.f32 %v2771, %v510
    %v2900 = vmul.f32 %v2775, %v146
    %v2901 = vmul.f32 %v2779, %v147
    %v2902 = vmul.f32 %v2783, %v511
    %v2903 = vmul.f32 %v2787, %v148
    %v2904 = vmul.f32 %v2791, %v512
    %v2905 = vmul.f32 %v2795, %v149
    %v2906 = vmul.f32 %v2799, %v150
    %v2907 = vmul.f32 %v2803, %v513
    %v2908 = vmul.f32 %v2807, %v151
    %v2909 = vmul.f32 %v2811, %v514
    %v2910 = vmul.f32 %v2815, %v152
    %v2911 = vmul.f32 %v2819, %v153
    %v2912 = vmul.f32 %v2823, %v515
    %v2913 = vmul.f32 %v2827, %v154
    %v2914 = vmul.f32 %v2831, %v516
    %v2915 = vmul.f32 %v2835, %v155
    %v2916 = vsel %vm573, %v2876, 0.0
    %v2917 = vsel %vm573, %v2877, 0.0
    %v2918 = vadd.f32 %v2916, %v2917
    %v2919 = vsel %vm573, %v2878, 0.0
    %v2920 = vadd.f32 %v2918, %v2919
    %v2921 = vsel %vm573, %v2879, 0.0
    %v2922 = vadd.f32 %v2920, %v2921
    %v2923 = vsel %vm573, %v2880, 0.0
    %v2924 = vadd.f32 %v2922, %v2923
    %2925 = vadd.xlane.f32.xlu0 %v2924
    %v2926 = vpop.xlane.xlu0 %2925
    %v2927 = vsel %vm573, %v2881, 0.0
    %v2928 = vsel %vm573, %v2882, 0.0
    %v2929 = vadd.f32 %v2927, %v2928
    %v2930 = vsel %vm573, %v2883, 0.0
    %v2931 = vadd.f32 %v2929, %v2930
    %v2932 = vsel %vm573, %v2884, 0.0
    %v2933 = vadd.f32 %v2931, %v2932
    %v2934 = vsel %vm573, %v2885, 0.0
    %v2935 = vadd.f32 %v2933, %v2934
    %2936 = vadd.xlane.f32.xlu0 %v2935
    %v2937 = vpop.xlane.xlu0 %2936
    %v2938 = vsel %vm573, %v2886, 0.0
    %v2939 = vsel %vm573, %v2887, 0.0
    %v2940 = vadd.f32 %v2938, %v2939
    %v2941 = vsel %vm573, %v2888, 0.0
    %v2942 = vadd.f32 %v2940, %v2941
    %v2943 = vsel %vm573, %v2889, 0.0
    %v2944 = vadd.f32 %v2942, %v2943
    %v2945 = vsel %vm573, %v2890, 0.0
    %v2946 = vadd.f32 %v2944, %v2945
    %2947 = vadd.xlane.f32.xlu0 %v2946
    %v2948 = vpop.xlane.xlu0 %2947
    %v2949 = vsel %vm573, %v2891, 0.0
    %v2950 = vsel %vm573, %v2892, 0.0
    %v2951 = vadd.f32 %v2949, %v2950
    %v2952 = vsel %vm573, %v2893, 0.0
    %v2953 = vadd.f32 %v2951, %v2952
    %v2954 = vsel %vm573, %v2894, 0.0
    %v2955 = vadd.f32 %v2953, %v2954
    %v2956 = vsel %vm573, %v2895, 0.0
    %v2957 = vadd.f32 %v2955, %v2956
    %2958 = vadd.xlane.f32.xlu0 %v2957
    %v2959 = vpop.xlane.xlu0 %2958
    %v2960 = vsel %vm573, %v2896, 0.0
    %v2961 = vsel %vm573, %v2897, 0.0
    %v2962 = vadd.f32 %v2960, %v2961
    %v2963 = vsel %vm573, %v2898, 0.0
    %v2964 = vadd.f32 %v2962, %v2963
    %v2965 = vsel %vm573, %v2899, 0.0
    %v2966 = vadd.f32 %v2964, %v2965
    %v2967 = vsel %vm573, %v2900, 0.0
    %v2968 = vadd.f32 %v2966, %v2967
    %2969 = vadd.xlane.f32.xlu0 %v2968
    %v2970 = vpop.xlane.xlu0 %2969
    %v2971 = vsel %vm573, %v2901, 0.0
    %v2972 = vsel %vm573, %v2902, 0.0
    %v2973 = vadd.f32 %v2971, %v2972
    %v2974 = vsel %vm573, %v2903, 0.0
    %v2975 = vadd.f32 %v2973, %v2974
    %v2976 = vsel %vm573, %v2904, 0.0
    %v2977 = vadd.f32 %v2975, %v2976
    %v2978 = vsel %vm573, %v2905, 0.0
    %v2979 = vadd.f32 %v2977, %v2978
    %2980 = vadd.xlane.f32.xlu0 %v2979
    %v2981 = vpop.xlane.xlu0 %2980
    %v2982 = vsel %vm573, %v2906, 0.0
    %v2983 = vsel %vm573, %v2907, 0.0
    %v2984 = vadd.f32 %v2982, %v2983
    %v2985 = vsel %vm573, %v2908, 0.0
    %v2986 = vadd.f32 %v2984, %v2985
    %v2987 = vsel %vm573, %v2909, 0.0
    %v2988 = vadd.f32 %v2986, %v2987
    %v2989 = vsel %vm573, %v2910, 0.0
    %v2990 = vadd.f32 %v2988, %v2989
    %2991 = vadd.xlane.f32.xlu0 %v2990
    %v2992 = vpop.xlane.xlu0 %2991
    %v2993 = vsel %vm573, %v2911, 0.0
    %v2994 = vsel %vm573, %v2912, 0.0
    %v2995 = vadd.f32 %v2993, %v2994
    %v2996 = vsel %vm573, %v2913, 0.0
    %v2997 = vadd.f32 %v2995, %v2996
    %v2998 = vsel %vm573, %v2914, 0.0
    %v2999 = vadd.f32 %v2997, %v2998
    %v3000 = vsel %vm573, %v2915, 0.0
    %v3001 = vadd.f32 %v2999, %v3000
    %3002 = vadd.xlane.f32.xlu0 %v3001
    %v3003 = vpop.xlane.xlu0 %3002
    %v3004 = vadd.f32 %v2926, %v669
    %v3005 = vadd.f32 %v2937, %v676
    %v3006 = vadd.f32 %v2948, %v683
    %v3007 = vadd.f32 %v2959, %v690
    %v3008 = vadd.f32 %v2970, %v697
    %v3009 = vadd.f32 %v2981, %v704
    %v3010 = vadd.f32 %v2992, %v711
    %v3011 = vadd.f32 %v3003, %v718
    %v3012 = vmul.f32 %v3004, %v742
    %v3013 = vmul.f32 %v3005, %v742
    %v3014 = vmul.f32 %v3006, %v742
    %v3015 = vmul.f32 %v3007, %v742
    %v3016 = vmul.f32 %v3008, %v742
    %v3017 = vmul.f32 %v3009, %v742
    %v3018 = vmul.f32 %v3010, %v742
    %v3019 = vmul.f32 %v3011, %v742
    %v3021 = vlaneseq
    %v3022 = vshrl.u32 %v3021, 7
    %v3023 = vsub.s32 0, %v3022
    %v3024 = vrot.slane %v2553, %v3023
    %3026 = vbcast.lane.b32.xlu0 %v3024, 256
    %v3027 = vpop.permute.xlu0 %3026
    %v3028 = vlaneseq
    %v3029 = vshrl.u32 %v3028, 7
    %v3030 = vsub.s32 1, %v3029
    %v3031 = vrot.slane %v2553, %v3030
    %3033 = vbcast.lane.b32.xlu0 %v3031, 256
    %v3034 = vpop.permute.xlu0 %3033
    %v3035 = vlaneseq
    %v3036 = vshrl.u32 %v3035, 7
    %v3037 = vsub.s32 2, %v3036
    %v3038 = vrot.slane %v2553, %v3037
    %3040 = vbcast.lane.b32.xlu0 %v3038, 256
    %v3041 = vpop.permute.xlu0 %3040
    %v3042 = vlaneseq
    %v3043 = vshrl.u32 %v3042, 7
    %v3044 = vsub.s32 3, %v3043
    %v3045 = vrot.slane %v2553, %v3044
    %3047 = vbcast.lane.b32.xlu0 %v3045, 256
    %v3048 = vpop.permute.xlu0 %3047
    %v3049 = vlaneseq
    %v3050 = vshrl.u32 %v3049, 7
    %v3051 = vsub.s32 4, %v3050
    %v3052 = vrot.slane %v2553, %v3051
    %3054 = vbcast.lane.b32.xlu0 %v3052, 256
    %v3055 = vpop.permute.xlu0 %3054
    %v3056 = vlaneseq
    %v3057 = vshrl.u32 %v3056, 7
    %v3058 = vsub.s32 5, %v3057
    %v3059 = vrot.slane %v2553, %v3058
    %3061 = vbcast.lane.b32.xlu0 %v3059, 256
    %v3062 = vpop.permute.xlu0 %3061
    %v3063 = vlaneseq
    %v3064 = vshrl.u32 %v3063, 7
    %v3065 = vsub.s32 6, %v3064
    %v3066 = vrot.slane %v2553, %v3065
    %3068 = vbcast.lane.b32.xlu0 %v3066, 256
    %v3069 = vpop.permute.xlu0 %3068
    %v3070 = vlaneseq
    %v3071 = vshrl.u32 %v3070, 7
    %v3072 = vsub.s32 7, %v3071
    %v3073 = vrot.slane %v2553, %v3072
    %3075 = vbcast.lane.b32.xlu0 %v3073, 256
    %v3076 = vpop.permute.xlu0 %3075
    %v3085 = vadd.f32 %v3012, %v3027
    %v3086 = vadd.f32 %v3013, %v3034
    %v3087 = vadd.f32 %v3014, %v3041
    %v3088 = vadd.f32 %v3015, %v3048
    %v3089 = vadd.f32 %v3016, %v3055
    %v3090 = vadd.f32 %v3017, %v3062
    %v3091 = vadd.f32 %v3018, %v3069
    %v3092 = vadd.f32 %v3019, %v3076
    %3101 = vset.pattern.permute.xlu0 0
    %3102 = vperm.xlu0 %3101, %v3085
    %v3103 = vpop.permute.xlu0 %3102
    %3104 = vset.pattern.permute.xlu0 0
    %3105 = vperm.xlu0 %3104, %v3086
    %v3106 = vpop.permute.xlu0 %3105
    %3107 = vset.pattern.permute.xlu0 0
    %3108 = vperm.xlu0 %3107, %v3087
    %v3109 = vpop.permute.xlu0 %3108
    %3110 = vset.pattern.permute.xlu0 0
    %3111 = vperm.xlu0 %3110, %v3088
    %v3112 = vpop.permute.xlu0 %3111
    %3113 = vset.pattern.permute.xlu0 0
    %3114 = vperm.xlu0 %3113, %v3089
    %v3115 = vpop.permute.xlu0 %3114
    %3116 = vset.pattern.permute.xlu0 0
    %3117 = vperm.xlu0 %3116, %v3090
    %v3118 = vpop.permute.xlu0 %3117
    %3119 = vset.pattern.permute.xlu0 0
    %3120 = vperm.xlu0 %3119, %v3091
    %v3121 = vpop.permute.xlu0 %3120
    %3122 = vset.pattern.permute.xlu0 0
    %3123 = vperm.xlu0 %3122, %v3092
    %v3124 = vpop.permute.xlu0 %3123
    %v3125 = vlaneseq
    %v3126 = vshrl.u32 %v3125, 7
    %v3127 = vsub.s32 %v858, %v3126
    %v3128 = vrot.slane %v3103, %v3127
    %v3129 = vlaneseq
    %v3130 = vshrl.u32 %v3129, 7
    %v3131 = vsub.s32 %v858, %v3130
    %v3132 = vrot.slane %v3106, %v3131
    %v3133 = vlaneseq
    %v3134 = vshrl.u32 %v3133, 7
    %v3135 = vsub.s32 %v858, %v3134
    %v3136 = vrot.slane %v3109, %v3135
    %v3137 = vlaneseq
    %v3138 = vshrl.u32 %v3137, 7
    %v3139 = vsub.s32 %v858, %v3138
    %v3140 = vrot.slane %v3112, %v3139
    %v3141 = vlaneseq
    %v3142 = vshrl.u32 %v3141, 7
    %v3143 = vsub.s32 %v858, %v3142
    %v3144 = vrot.slane %v3115, %v3143
    %v3145 = vlaneseq
    %v3146 = vshrl.u32 %v3145, 7
    %v3147 = vsub.s32 %v858, %v3146
    %v3148 = vrot.slane %v3118, %v3147
    %v3149 = vlaneseq
    %v3150 = vshrl.u32 %v3149, 7
    %v3151 = vsub.s32 %v858, %v3150
    %v3152 = vrot.slane %v3121, %v3151
    %v3153 = vlaneseq
    %v3154 = vshrl.u32 %v3153, 7
    %v3155 = vsub.s32 %v858, %v3154
    %v3156 = vrot.slane %v3124, %v3155
    %v3157 = vsel %vm891, %v3132, %v3128
    %v3158 = vsel %vm893, %v3136, %v3157
    %v3159 = vsel %vm895, %v3140, %v3158
    %v3160 = vsel %vm897, %v3144, %v3159
    %v3161 = vsel %vm899, %v3148, %v3160
    %v3162 = vsel %vm901, %v3152, %v3161
    %v3163 = vsel %vm903, %v3156, %v3162
    %s3165 = scalar_lea.vmem %s9, 16
    %3166 = vst.msk [vmem:[%s3165] sm:$0xff] %vm906, %v3163
    // Predicated region
    $region42: #{tpu_custom_call.1} parent=1 // pred_check
      _
    $region43: #{tpu_custom_call.1} parent=1 // pred_check_branch
      %3168 = sbr.rel (0) target = $region45
    $region44: #{tpu_custom_call.1} parent=1 // pred_region
      _
    $region45: #{tpu_custom_call.1} parent=1 // pred_fallthru
      _
    // Predicated region
    $region46: #{tpu_custom_call.1} parent=1 // pred_check
      _
    $region47: #{tpu_custom_call.1} parent=1 // pred_check_branch
      %3170 = sbr.rel (0) target = $region49
    $region48: #{tpu_custom_call.1} parent=1 // pred_region
      _
    $region49: #{tpu_custom_call.1} parent=1 // pred_fallthru
      _
    %3171 = vsyncpa [#allocation3], 1

</llo_original>
